<compile_context>
chip_gen: v7x
topology: tpu7x:2x2x1
jax: 0.10.0
libtpu: 0.0.40
codegen_flags: <defaults>
</compile_context>

<pallas_src>
import jax
import jax.numpy as jnp
import numpy as np
from jax.experimental import pallas as pl
from jax.experimental.pallas import tpu as pltpu


def _make_kernel(num_layers, hidden_dim, seq_len, batch_pad):
    H = hidden_dim
    Bp = batch_pad

    def kernel(x_ref, wih0_ref, whh0_ref, *refs):
        # refs layout: [w_fused_1 .. w_fused_{L-1}] [b_0 .. b_{L-1}]
        #              gmm_wT, gmm_b, out_ref, hs_scratch
        n_rest = num_layers - 1
        w_rest_refs = refs[0:n_rest]
        b_refs = refs[n_rest:n_rest + num_layers]
        gmm_wT_ref = refs[n_rest + num_layers]
        gmm_b_ref = refs[n_rest + num_layers + 1]
        out_ref = refs[n_rest + num_layers + 2]
        hs_ref = refs[n_rest + num_layers + 3]

        # ---- One-time work off the serial critical path ----
        # Layer-0 input projection for all timesteps in a single MXU push,
        # with the layer-0 bias folded in. f32 accumulate, kept resident.
        x_gates = (
            jnp.dot(x_ref[...], wih0_ref[...],
                    preferred_element_type=jnp.float32)
            + jnp.broadcast_to(b_refs[0][...], (seq_len * Bp, 4 * H)))

        # Hoist weight loads and bias broadcasts out of the unrolled loop.
        whh0 = whh0_ref[...]                                      # bf16 (H, 4H)
        w_rest = [w_rest_refs[i][...] for i in range(n_rest)]     # bf16 (2H, 4H)
        b_bc = [jnp.broadcast_to(b_refs[l][...], (Bp, 4 * H))
                for l in range(1, num_layers)]                    # f32 (Bp, 4H)

        h = [jnp.zeros((Bp, H), jnp.float32) for _ in range(num_layers)]
        c = [jnp.zeros((Bp, H), jnp.float32) for _ in range(num_layers)]

        def gate_update(gates, c_prev):
            # One full-width (4H = 128 lanes) sigmoid EUP push; tanh on g only.
            sig = jax.nn.sigmoid(gates)
            i_g = sig[:, 0 * H:1 * H]
            f_g = sig[:, 1 * H:2 * H]
            o_g = sig[:, 3 * H:4 * H]
            g_g = jnp.tanh(gates[:, 2 * H:3 * H])
            c_new = f_g * c_prev + i_g * g_g
            h_new = o_g * jnp.tanh(c_new)
            return h_new, c_new

        # seq_len is small & static -> fully unrolled recurrence, no grid steps.
        for t in range(seq_len):
            # Layer 0: only the aligned K=H recurrent matmul is per-step work.
            gates0 = (x_gates[t * Bp:(t + 1) * Bp, :]
                      + jnp.dot(h[0].astype(jnp.bfloat16), whh0,
                                preferred_element_type=jnp.float32))
            h[0], c[0] = gate_update(gates0, c[0])
            inp = h[0]
            for l in range(1, num_layers):
                # Fused gate matmul; the concat offset (H=32 lanes) is aligned.
                z = jnp.concatenate([inp, h[l]], axis=-1).astype(jnp.bfloat16)
                gates = (jnp.dot(z, w_rest[l - 1],
                                 preferred_element_type=jnp.float32)
                         + b_bc[l - 1])
                h[l], c[l] = gate_update(gates, c[l])
                inp = h[l]
            # Sublane-aligned store (Bp is a multiple of 8, t is static).
            hs_ref[pl.ds(t * Bp, Bp), :] = inp

        # Batched GMM projection over all timesteps + one lane-dense store.
        gmm = (jnp.dot(hs_ref[...].astype(jnp.bfloat16), gmm_wT_ref[...],
                       preferred_element_type=jnp.float32)
               + gmm_b_ref[...])
        out_ref[...] = gmm.astype(out_ref.dtype)

    return kernel


def lstm_gmm_pallas(x, wih0_T, whh0_T, w_fused_rest, b_list,
                    gmm_wT_pad, gmm_b_pad, num_layers, hidden_dim, out_dim):
    """x: (seq, batch, in_dim) f32. Returns (seq, batch, out_dim) f32."""
    seq_len, batch, in_dim = x.shape
    Bp = ((batch + 7) // 8) * 8          # pad batch to one full sublane tile
    out_pad = gmm_wT_pad.shape[1]        # lane-dense output width (>=128)

    x_pad = jnp.zeros((seq_len, Bp, in_dim), jnp.bfloat16)
    x_pad = x_pad.at[:, :batch, :].set(x.astype(jnp.bfloat16))
    x_flat = x_pad.reshape(seq_len * Bp, in_dim)   # rows t*Bp..t*Bp+Bp-1 = step t

    kernel = _make_kernel(num_layers, hidden_dim, seq_len, Bp)
    inputs = [x_flat, wih0_T, whh0_T, *w_fused_rest, *b_list,
              gmm_wT_pad, gmm_b_pad]
    vmem = pl.BlockSpec(memory_space=pltpu.MemorySpace.VMEM)

    flat = pl.pallas_call(
        kernel,
        out_shape=jax.ShapeDtypeStruct((seq_len * Bp, out_pad), jnp.float32),
        in_specs=[vmem] * len(inputs),
        out_specs=vmem,
        scratch_shapes=[pltpu.VMEM((seq_len * Bp, hidden_dim), jnp.float32)],
    )(*inputs)
    return flat.reshape(seq_len, Bp, out_pad)[:, :batch, :out_dim]


class SimulatedWorldModelPallas:
    """JAX/Pallas port of SimulatedWorldModel (fixed random weights, eval only)."""

    def __init__(self, action_dim, state_dim, num_gaussian, lstm_num_layer,
                 lstm_hidden_dim, key=jax.random.PRNGKey(3212)):
        self.action_dim = action_dim
        self.state_dim = state_dim
        self.num_gaussian = num_gaussian
        self.lstm_num_layer = lstm_num_layer
        self.lstm_hidden_dim = lstm_hidden_dim

        H = lstm_hidden_dim
        in_dim = action_dim + state_dim
        out_dim = state_dim * num_gaussian + 1
        self.out_dim = out_dim
        out_pad = ((out_dim + 127) // 128) * 128

        # Deterministic N(0, 1) init (mirrors torch.manual_seed(3212) + normal_).
        # TODO(synk): exact bit-equality with torch's RNG stream is not reproduced.
        keys = jax.random.split(key, 4 * lstm_num_layer + 2)
        self.wih_T, self.whh_T, self.b = [], [], []
        self.w_fused_rest = []
        k = 0
        for l in range(lstm_num_layer):
            d_l = in_dim if l == 0 else H
            w_ih = jax.random.normal(keys[k], (4 * H, d_l), jnp.float32); k += 1
            w_hh = jax.random.normal(keys[k], (4 * H, H), jnp.float32); k += 1
            b_ih = jax.random.normal(keys[k], (4 * H,), jnp.float32); k += 1
            b_hh = jax.random.normal(keys[k], (4 * H,), jnp.float32); k += 1
            wih_T = jnp.asarray(w_ih.T).astype(jnp.bfloat16)   # (d_l, 4H)
            whh_T = jnp.asarray(w_hh.T).astype(jnp.bfloat16)   # (H, 4H)
            self.wih_T.append(wih_T)
            self.whh_T.append(whh_T)
            self.b.append((b_ih + b_hh).reshape(1, 4 * H))      # f32
            if l == 0:
                self.wih0_T = wih_T                             # kept separate
                self.whh0_T = whh_T
            else:
                # Pre-stacked fused gate weight: (2H, 4H) bf16, 32-lane aligned.
                self.w_fused_rest.append(jnp.concatenate([wih_T, whh_T], axis=0))
        gmm_w = jax.random.normal(keys[k], (out_dim, H), jnp.float32); k += 1
        gmm_b = jax.random.normal(keys[k], (out_dim,), jnp.float32)
        self.gmm_wT = jnp.asarray(gmm_w.T).astype(jnp.bfloat16)  # (H, out_dim) for ref
        self.gmm_b = gmm_b.reshape(1, out_dim)                   # f32 for ref
        # Lane-dense (128-wide) padded GMM weights for the kernel's output store.
        self.gmm_wT_pad = jnp.zeros((H, out_pad), jnp.bfloat16
                                    ).at[:, :out_dim].set(self.gmm_wT)
        self.gmm_b_pad = jnp.zeros((1, out_pad), jnp.float32
                                   ).at[:, :out_dim].set(self.gmm_b)

    def forward(self, actions, cur_states):
        """actions: (seq, batch, action_dim); cur_states: (seq, batch, state_dim)."""
        # TODO(synk): hidden state is re-zeroed each call (init_hidden semantics);
        # it is not carried across forward calls like the stateful torch module.
        seq_len, batch_size = actions.shape[0], actions.shape[1]
        x = jnp.concatenate([actions, cur_states], axis=-1).astype(jnp.float32)
        gmm_outs = lstm_gmm_pallas(
            x, self.wih0_T, self.whh0_T, self.w_fused_rest, self.b,
            self.gmm_wT_pad, self.gmm_b_pad,
            self.lstm_num_layer, self.lstm_hidden_dim, self.out_dim)
        mus = gmm_outs[:, :, :-1].reshape(
            seq_len, batch_size, self.num_gaussian, self.state_dim)
        rs = gmm_outs[:, :, -1]
        return mus, rs

    # Pure-JAX reference with the PyTorch LSTM structure (separate W_ih/W_hh,
    # per-step GMM) and the same bf16-input / f32-accumulate dot convention.
    def forward_ref(self, actions, cur_states):
        H = self.lstm_hidden_dim
        x = jnp.concatenate([actions, cur_states], axis=-1).astype(jnp.float32)
        seq_len, batch, _ = x.shape
        h = [jnp.zeros((batch, H), jnp.float32) for _ in range(self.lstm_num_layer)]
        c = [jnp.zeros((batch, H), jnp.float32) for _ in range(self.lstm_num_layer)]
        outs = []
        for t in range(seq_len):
            inp = x[t]
            for l in range(self.lstm_num_layer):
                gates = (
                    jnp.dot(inp.astype(jnp.bfloat16), self.wih_T[l],
                            preferred_element_type=jnp.float32)
                    + jnp.dot(h[l].astype(jnp.bfloat16), self.whh_T[l],
                              preferred_element_type=jnp.float32)
                    + self.b[l])
                i_g = jax.nn.sigmoid(gates[:, 0 * H:1 * H])
                f_g = jax.nn.sigmoid(gates[:, 1 * H:2 * H])
                g_g = jnp.tanh(gates[:, 2 * H:3 * H])
                o_g = jax.nn.sigmoid(gates[:, 3 * H:4 * H])
                c[l] = f_g * c[l] + i_g * g_g
                h[l] = o_g * jnp.tanh(c[l])
                inp = h[l]
            outs.append(jnp.dot(inp.astype(jnp.bfloat16), self.gmm_wT,
                                preferred_element_type=jnp.float32) + self.gmm_b)
        gmm_outs = jnp.stack(outs, axis=0)
        mus = gmm_outs[:, :, :-1].reshape(
            seq_len, batch, self.num_gaussian, self.state_dim)
        rs = gmm_outs[:, :, -1]
        return mus, rs


if __name__ == "__main__":
    action_dim, state_dim = 3, 5
    num_gaussian, lstm_num_layer, lstm_hidden_dim = 3, 2, 32
    seq_len, batch = 8, 2

    model = SimulatedWorldModelPallas(
        action_dim, state_dim, num_gaussian, lstm_num_layer, lstm_hidden_dim)

    key = jax.random.PRNGKey(0)
    ka, ks = jax.random.split(key)
    actions = jax.random.normal(ka, (seq_len, batch, action_dim), jnp.float32)
    cur_states = jax.random.normal(ks, (seq_len, batch, state_dim), jnp.float32)

    mus, rs = model.forward(actions, cur_states)
    jax.block_until_ready((mus, rs))

    mus_ref, rs_ref = model.forward_ref(actions, cur_states)
    # Tolerance covers EUP-vs-XLA transcendental differences and the slightly
    # different f32 accumulation orders (batched/fused vs per-step/split dots)
    # propagated through the recurrence; do not expect bit-equality.
    np.testing.assert_allclose(np.asarray(mus), np.asarray(mus_ref),
                               rtol=1e-2, atol=1e-2)
    np.testing.assert_allclose(np.asarray(rs), np.asarray(rs_ref),
                               rtol=1e-2, atol=1e-2)
    assert mus.shape == (seq_len, batch, num_gaussian, state_dim)
    assert rs.shape == (seq_len, batch)
    print("KERNEL_OK")
</pallas_src>

<mosaic_0001>
module attributes {stable_mosaic.version = 11 : i64} {
  func.func @kernel(%arg0: memref<64x8xbf16, #tpu.memory_space<vmem>>, %arg1: memref<8x128xbf16, #tpu.memory_space<vmem>>, %arg2: memref<32x128xbf16, #tpu.memory_space<vmem>>, %arg3: memref<64x128xbf16, #tpu.memory_space<vmem>>, %arg4: memref<1x128xf32, #tpu.memory_space<vmem>>, %arg5: memref<1x128xf32, #tpu.memory_space<vmem>>, %arg6: memref<32x128xbf16, #tpu.memory_space<vmem>>, %arg7: memref<1x128xf32, #tpu.memory_space<vmem>>, %arg8: memref<64x128xf32, #tpu.memory_space<vmem>>, %arg9: memref<64x32xf32, #tpu.memory_space<vmem>>) attributes {dimension_semantics = [], scalar_prefetch = 0 : i64, scratch_operands = 1 : i64, tpu.core_type = #tpu.core_type<tc>} {
    %c0 = arith.constant 0 : index
    %c0_0 = arith.constant 0 : index
    %0 = vector.load %arg0[%c0, %c0_0] : memref<64x8xbf16, #tpu.memory_space<vmem>>, vector<64x8xbf16>
    %c0_1 = arith.constant 0 : index
    %c0_2 = arith.constant 0 : index
    %1 = vector.load %arg1[%c0_1, %c0_2] : memref<8x128xbf16, #tpu.memory_space<vmem>>, vector<8x128xbf16>
    %cst = arith.constant dense<0.000000e+00> : vector<64x128xf32>
    %2 = tpu.matmul %0, %1, %cst {dimension_numbers = #tpu.dot_dimension_numbers<[1], [0], [0], [1], [0, 0, 1, 1], [], []>} : vector<64x8xbf16>, vector<8x128xbf16>, vector<64x128xf32> -> vector<64x128xf32>
    %c0_3 = arith.constant 0 : index
    %c0_4 = arith.constant 0 : index
    %3 = vector.load %arg4[%c0_3, %c0_4] : memref<1x128xf32, #tpu.memory_space<vmem>>, vector<1x128xf32>
    %4 = vector.shape_cast %3 : vector<1x128xf32> to vector<1x128xf32>
    %5 = vector.broadcast %4 : vector<1x128xf32> to vector<64x128xf32>
    %6 = arith.addf %2, %5 : vector<64x128xf32>
    %c0_5 = arith.constant 0 : index
    %c0_6 = arith.constant 0 : index
    %7 = vector.load %arg2[%c0_5, %c0_6] : memref<32x128xbf16, #tpu.memory_space<vmem>>, vector<32x128xbf16>
    %c0_7 = arith.constant 0 : index
    %c0_8 = arith.constant 0 : index
    %8 = vector.load %arg3[%c0_7, %c0_8] : memref<64x128xbf16, #tpu.memory_space<vmem>>, vector<64x128xbf16>
    %c0_9 = arith.constant 0 : index
    %c0_10 = arith.constant 0 : index
    %9 = vector.load %arg5[%c0_9, %c0_10] : memref<1x128xf32, #tpu.memory_space<vmem>>, vector<1x128xf32>
    %10 = vector.shape_cast %9 : vector<1x128xf32> to vector<1x128xf32>
    %11 = vector.broadcast %10 : vector<1x128xf32> to vector<8x128xf32>
    %cst_11 = arith.constant 0.000000e+00 : f32
    %12 = vector.broadcast %cst_11 : f32 to vector<8x32xf32>
    %cst_12 = arith.constant 0.000000e+00 : f32
    %13 = vector.broadcast %cst_12 : f32 to vector<8x32xf32>
    %cst_13 = arith.constant 0.000000e+00 : f32
    %14 = vector.broadcast %cst_13 : f32 to vector<8x32xf32>
    %cst_14 = arith.constant 0.000000e+00 : f32
    %15 = vector.broadcast %cst_14 : f32 to vector<8x32xf32>
    %16 = vector.extract_strided_slice %6 {offsets = [0, 0], sizes = [8, 128], strides = [1, 1]} : vector<64x128xf32> to vector<8x128xf32>
    %17 = arith.truncf %12 : vector<8x32xf32> to vector<8x32xbf16>
    %cst_15 = arith.constant dense<0.000000e+00> : vector<8x128xf32>
    %18 = tpu.matmul %17, %7, %cst_15 {dimension_numbers = #tpu.dot_dimension_numbers<[1], [0], [0], [1], [0, 0, 1, 1], [], []>} : vector<8x32xbf16>, vector<32x128xbf16>, vector<8x128xf32> -> vector<8x128xf32>
    %19 = arith.addf %16, %18 : vector<8x128xf32>
    %20 = arith.negf %19 : vector<8x128xf32>
    %21 = math.exp %20 : vector<8x128xf32>
    %cst_16 = arith.constant 1.000000e+00 : f32
    %22 = vector.broadcast %cst_16 : f32 to vector<8x128xf32>
    %23 = arith.addf %22, %21 : vector<8x128xf32>
    %24 = arith.divf %22, %23 : vector<8x128xf32>
    %25 = vector.extract_strided_slice %24 {offsets = [0, 0], sizes = [8, 32], strides = [1, 1]} : vector<8x128xf32> to vector<8x32xf32>
    %26 = vector.extract_strided_slice %24 {offsets = [0, 32], sizes = [8, 32], strides = [1, 1]} : vector<8x128xf32> to vector<8x32xf32>
    %27 = vector.extract_strided_slice %24 {offsets = [0, 96], sizes = [8, 32], strides = [1, 1]} : vector<8x128xf32> to vector<8x32xf32>
    %28 = vector.extract_strided_slice %19 {offsets = [0, 64], sizes = [8, 32], strides = [1, 1]} : vector<8x128xf32> to vector<8x32xf32>
    %29 = math.tanh %28 : vector<8x32xf32>
    %30 = arith.mulf %26, %14 : vector<8x32xf32>
    %31 = arith.mulf %25, %29 : vector<8x32xf32>
    %32 = arith.addf %30, %31 : vector<8x32xf32>
    %33 = math.tanh %32 : vector<8x32xf32>
    %34 = arith.mulf %27, %33 : vector<8x32xf32>
    %35 = tpu.concatenate %34, %13 in 1 : vector<8x32xf32>, vector<8x32xf32> -> vector<8x64xf32>
    %36 = arith.truncf %35 : vector<8x64xf32> to vector<8x64xbf16>
    %cst_17 = arith.constant dense<0.000000e+00> : vector<8x128xf32>
    %37 = tpu.matmul %36, %8, %cst_17 {dimension_numbers = #tpu.dot_dimension_numbers<[1], [0], [0], [1], [0, 0, 1, 1], [], []>} : vector<8x64xbf16>, vector<64x128xbf16>, vector<8x128xf32> -> vector<8x128xf32>
    %38 = arith.addf %37, %11 : vector<8x128xf32>
    %39 = arith.negf %38 : vector<8x128xf32>
    %40 = math.exp %39 : vector<8x128xf32>
    %cst_18 = arith.constant 1.000000e+00 : f32
    %41 = vector.broadcast %cst_18 : f32 to vector<8x128xf32>
    %42 = arith.addf %41, %40 : vector<8x128xf32>
    %43 = arith.divf %41, %42 : vector<8x128xf32>
    %44 = vector.extract_strided_slice %43 {offsets = [0, 0], sizes = [8, 32], strides = [1, 1]} : vector<8x128xf32> to vector<8x32xf32>
    %45 = vector.extract_strided_slice %43 {offsets = [0, 32], sizes = [8, 32], strides = [1, 1]} : vector<8x128xf32> to vector<8x32xf32>
    %46 = vector.extract_strided_slice %43 {offsets = [0, 96], sizes = [8, 32], strides = [1, 1]} : vector<8x128xf32> to vector<8x32xf32>
    %47 = vector.extract_strided_slice %38 {offsets = [0, 64], sizes = [8, 32], strides = [1, 1]} : vector<8x128xf32> to vector<8x32xf32>
    %48 = math.tanh %47 : vector<8x32xf32>
    %49 = arith.mulf %45, %15 : vector<8x32xf32>
    %50 = arith.mulf %44, %48 : vector<8x32xf32>
    %51 = arith.addf %49, %50 : vector<8x32xf32>
    %52 = math.tanh %51 : vector<8x32xf32>
    %53 = arith.mulf %46, %52 : vector<8x32xf32>
    %c0_19 = arith.constant 0 : index
    %c0_20 = arith.constant 0 : index
    %54 = vector.load %arg9[%c0_19, %c0_20] : memref<64x32xf32, #tpu.memory_space<vmem>>, vector<8x32xf32>
    tpu.vector_store %arg9[%c0_19, %c0_20], %53 {strides = array<i32>} : memref<64x32xf32, #tpu.memory_space<vmem>>, vector<8x32xf32>,
    %55 = vector.extract_strided_slice %6 {offsets = [8, 0], sizes = [8, 128], strides = [1, 1]} : vector<64x128xf32> to vector<8x128xf32>
    %56 = arith.truncf %34 : vector<8x32xf32> to vector<8x32xbf16>
    %cst_21 = arith.constant dense<0.000000e+00> : vector<8x128xf32>
    %57 = tpu.matmul %56, %7, %cst_21 {dimension_numbers = #tpu.dot_dimension_numbers<[1], [0], [0], [1], [0, 0, 1, 1], [], []>} : vector<8x32xbf16>, vector<32x128xbf16>, vector<8x128xf32> -> vector<8x128xf32>
    %58 = arith.addf %55, %57 : vector<8x128xf32>
    %59 = arith.negf %58 : vector<8x128xf32>
    %60 = math.exp %59 : vector<8x128xf32>
    %cst_22 = arith.constant 1.000000e+00 : f32
    %61 = vector.broadcast %cst_22 : f32 to vector<8x128xf32>
    %62 = arith.addf %61, %60 : vector<8x128xf32>
    %63 = arith.divf %61, %62 : vector<8x128xf32>
    %64 = vector.extract_strided_slice %63 {offsets = [0, 0], sizes = [8, 32], strides = [1, 1]} : vector<8x128xf32> to vector<8x32xf32>
    %65 = vector.extract_strided_slice %63 {offsets = [0, 32], sizes = [8, 32], strides = [1, 1]} : vector<8x128xf32> to vector<8x32xf32>
    %66 = vector.extract_strided_slice %63 {offsets = [0, 96], sizes = [8, 32], strides = [1, 1]} : vector<8x128xf32> to vector<8x32xf32>
    %67 = vector.extract_strided_slice %58 {offsets = [0, 64], sizes = [8, 32], strides = [1, 1]} : vector<8x128xf32> to vector<8x32xf32>
    %68 = math.tanh %67 : vector<8x32xf32>
    %69 = arith.mulf %65, %32 : vector<8x32xf32>
    %70 = arith.mulf %64, %68 : vector<8x32xf32>
    %71 = arith.addf %69, %70 : vector<8x32xf32>
    %72 = math.tanh %71 : vector<8x32xf32>
    %73 = arith.mulf %66, %72 : vector<8x32xf32>
    %74 = tpu.concatenate %73, %53 in 1 : vector<8x32xf32>, vector<8x32xf32> -> vector<8x64xf32>
    %75 = arith.truncf %74 : vector<8x64xf32> to vector<8x64xbf16>
    %cst_23 = arith.constant dense<0.000000e+00> : vector<8x128xf32>
    %76 = tpu.matmul %75, %8, %cst_23 {dimension_numbers = #tpu.dot_dimension_numbers<[1], [0], [0], [1], [0, 0, 1, 1], [], []>} : vector<8x64xbf16>, vector<64x128xbf16>, vector<8x128xf32> -> vector<8x128xf32>
    %77 = arith.addf %76, %11 : vector<8x128xf32>
    %78 = arith.negf %77 : vector<8x128xf32>
    %79 = math.exp %78 : vector<8x128xf32>
    %cst_24 = arith.constant 1.000000e+00 : f32
    %80 = vector.broadcast %cst_24 : f32 to vector<8x128xf32>
    %81 = arith.addf %80, %79 : vector<8x128xf32>
    %82 = arith.divf %80, %81 : vector<8x128xf32>
    %83 = vector.extract_strided_slice %82 {offsets = [0, 0], sizes = [8, 32], strides = [1, 1]} : vector<8x128xf32> to vector<8x32xf32>
    %84 = vector.extract_strided_slice %82 {offsets = [0, 32], sizes = [8, 32], strides = [1, 1]} : vector<8x128xf32> to vector<8x32xf32>
    %85 = vector.extract_strided_slice %82 {offsets = [0, 96], sizes = [8, 32], strides = [1, 1]} : vector<8x128xf32> to vector<8x32xf32>
    %86 = vector.extract_strided_slice %77 {offsets = [0, 64], sizes = [8, 32], strides = [1, 1]} : vector<8x128xf32> to vector<8x32xf32>
    %87 = math.tanh %86 : vector<8x32xf32>
    %88 = arith.mulf %84, %51 : vector<8x32xf32>
    %89 = arith.mulf %83, %87 : vector<8x32xf32>
    %90 = arith.addf %88, %89 : vector<8x32xf32>
    %91 = math.tanh %90 : vector<8x32xf32>
    %92 = arith.mulf %85, %91 : vector<8x32xf32>
    %c8 = arith.constant 8 : index
    %c0_25 = arith.constant 0 : index
    %93 = vector.load %arg9[%c8, %c0_25] : memref<64x32xf32, #tpu.memory_space<vmem>>, vector<8x32xf32>
    tpu.vector_store %arg9[%c8, %c0_25], %92 {strides = array<i32>} : memref<64x32xf32, #tpu.memory_space<vmem>>, vector<8x32xf32>,
    %94 = vector.extract_strided_slice %6 {offsets = [16, 0], sizes = [8, 128], strides = [1, 1]} : vector<64x128xf32> to vector<8x128xf32>
    %95 = arith.truncf %73 : vector<8x32xf32> to vector<8x32xbf16>
    %cst_26 = arith.constant dense<0.000000e+00> : vector<8x128xf32>
    %96 = tpu.matmul %95, %7, %cst_26 {dimension_numbers = #tpu.dot_dimension_numbers<[1], [0], [0], [1], [0, 0, 1, 1], [], []>} : vector<8x32xbf16>, vector<32x128xbf16>, vector<8x128xf32> -> vector<8x128xf32>
    %97 = arith.addf %94, %96 : vector<8x128xf32>
    %98 = arith.negf %97 : vector<8x128xf32>
    %99 = math.exp %98 : vector<8x128xf32>
    %cst_27 = arith.constant 1.000000e+00 : f32
    %100 = vector.broadcast %cst_27 : f32 to vector<8x128xf32>
    %101 = arith.addf %100, %99 : vector<8x128xf32>
    %102 = arith.divf %100, %101 : vector<8x128xf32>
    %103 = vector.extract_strided_slice %102 {offsets = [0, 0], sizes = [8, 32], strides = [1, 1]} : vector<8x128xf32> to vector<8x32xf32>
    %104 = vector.extract_strided_slice %102 {offsets = [0, 32], sizes = [8, 32], strides = [1, 1]} : vector<8x128xf32> to vector<8x32xf32>
    %105 = vector.extract_strided_slice %102 {offsets = [0, 96], sizes = [8, 32], strides = [1, 1]} : vector<8x128xf32> to vector<8x32xf32>
    %106 = vector.extract_strided_slice %97 {offsets = [0, 64], sizes = [8, 32], strides = [1, 1]} : vector<8x128xf32> to vector<8x32xf32>
    %107 = math.tanh %106 : vector<8x32xf32>
    %108 = arith.mulf %104, %71 : vector<8x32xf32>
    %109 = arith.mulf %103, %107 : vector<8x32xf32>
    %110 = arith.addf %108, %109 : vector<8x32xf32>
    %111 = math.tanh %110 : vector<8x32xf32>
    %112 = arith.mulf %105, %111 : vector<8x32xf32>
    %113 = tpu.concatenate %112, %92 in 1 : vector<8x32xf32>, vector<8x32xf32> -> vector<8x64xf32>
    %114 = arith.truncf %113 : vector<8x64xf32> to vector<8x64xbf16>
    %cst_28 = arith.constant dense<0.000000e+00> : vector<8x128xf32>
    %115 = tpu.matmul %114, %8, %cst_28 {dimension_numbers = #tpu.dot_dimension_numbers<[1], [0], [0], [1], [0, 0, 1, 1], [], []>} : vector<8x64xbf16>, vector<64x128xbf16>, vector<8x128xf32> -> vector<8x128xf32>
    %116 = arith.addf %115, %11 : vector<8x128xf32>
    %117 = arith.negf %116 : vector<8x128xf32>
    %118 = math.exp %117 : vector<8x128xf32>
    %cst_29 = arith.constant 1.000000e+00 : f32
    %119 = vector.broadcast %cst_29 : f32 to vector<8x128xf32>
    %120 = arith.addf %119, %118 : vector<8x128xf32>
    %121 = arith.divf %119, %120 : vector<8x128xf32>
    %122 = vector.extract_strided_slice %121 {offsets = [0, 0], sizes = [8, 32], strides = [1, 1]} : vector<8x128xf32> to vector<8x32xf32>
    %123 = vector.extract_strided_slice %121 {offsets = [0, 32], sizes = [8, 32], strides = [1, 1]} : vector<8x128xf32> to vector<8x32xf32>
    %124 = vector.extract_strided_slice %121 {offsets = [0, 96], sizes = [8, 32], strides = [1, 1]} : vector<8x128xf32> to vector<8x32xf32>
    %125 = vector.extract_strided_slice %116 {offsets = [0, 64], sizes = [8, 32], strides = [1, 1]} : vector<8x128xf32> to vector<8x32xf32>
    %126 = math.tanh %125 : vector<8x32xf32>
    %127 = arith.mulf %123, %90 : vector<8x32xf32>
    %128 = arith.mulf %122, %126 : vector<8x32xf32>
    %129 = arith.addf %127, %128 : vector<8x32xf32>
    %130 = math.tanh %129 : vector<8x32xf32>
    %131 = arith.mulf %124, %130 : vector<8x32xf32>
    %c16 = arith.constant 16 : index
    %c0_30 = arith.constant 0 : index
    %132 = vector.load %arg9[%c16, %c0_30] : memref<64x32xf32, #tpu.memory_space<vmem>>, vector<8x32xf32>
    tpu.vector_store %arg9[%c16, %c0_30], %131 {strides = array<i32>} : memref<64x32xf32, #tpu.memory_space<vmem>>, vector<8x32xf32>,
    %133 = vector.extract_strided_slice %6 {offsets = [24, 0], sizes = [8, 128], strides = [1, 1]} : vector<64x128xf32> to vector<8x128xf32>
    %134 = arith.truncf %112 : vector<8x32xf32> to vector<8x32xbf16>
    %cst_31 = arith.constant dense<0.000000e+00> : vector<8x128xf32>
    %135 = tpu.matmul %134, %7, %cst_31 {dimension_numbers = #tpu.dot_dimension_numbers<[1], [0], [0], [1], [0, 0, 1, 1], [], []>} : vector<8x32xbf16>, vector<32x128xbf16>, vector<8x128xf32> -> vector<8x128xf32>
    %136 = arith.addf %133, %135 : vector<8x128xf32>
    %137 = arith.negf %136 : vector<8x128xf32>
    %138 = math.exp %137 : vector<8x128xf32>
    %cst_32 = arith.constant 1.000000e+00 : f32
    %139 = vector.broadcast %cst_32 : f32 to vector<8x128xf32>
    %140 = arith.addf %139, %138 : vector<8x128xf32>
    %141 = arith.divf %139, %140 : vector<8x128xf32>
    %142 = vector.extract_strided_slice %141 {offsets = [0, 0], sizes = [8, 32], strides = [1, 1]} : vector<8x128xf32> to vector<8x32xf32>
    %143 = vector.extract_strided_slice %141 {offsets = [0, 32], sizes = [8, 32], strides = [1, 1]} : vector<8x128xf32> to vector<8x32xf32>
    %144 = vector.extract_strided_slice %141 {offsets = [0, 96], sizes = [8, 32], strides = [1, 1]} : vector<8x128xf32> to vector<8x32xf32>
    %145 = vector.extract_strided_slice %136 {offsets = [0, 64], sizes = [8, 32], strides = [1, 1]} : vector<8x128xf32> to vector<8x32xf32>
    %146 = math.tanh %145 : vector<8x32xf32>
    %147 = arith.mulf %143, %110 : vector<8x32xf32>
    %148 = arith.mulf %142, %146 : vector<8x32xf32>
    %149 = arith.addf %147, %148 : vector<8x32xf32>
    %150 = math.tanh %149 : vector<8x32xf32>
    %151 = arith.mulf %144, %150 : vector<8x32xf32>
    %152 = tpu.concatenate %151, %131 in 1 : vector<8x32xf32>, vector<8x32xf32> -> vector<8x64xf32>
    %153 = arith.truncf %152 : vector<8x64xf32> to vector<8x64xbf16>
    %cst_33 = arith.constant dense<0.000000e+00> : vector<8x128xf32>
    %154 = tpu.matmul %153, %8, %cst_33 {dimension_numbers = #tpu.dot_dimension_numbers<[1], [0], [0], [1], [0, 0, 1, 1], [], []>} : vector<8x64xbf16>, vector<64x128xbf16>, vector<8x128xf32> -> vector<8x128xf32>
    %155 = arith.addf %154, %11 : vector<8x128xf32>
    %156 = arith.negf %155 : vector<8x128xf32>
    %157 = math.exp %156 : vector<8x128xf32>
    %cst_34 = arith.constant 1.000000e+00 : f32
    %158 = vector.broadcast %cst_34 : f32 to vector<8x128xf32>
    %159 = arith.addf %158, %157 : vector<8x128xf32>
    %160 = arith.divf %158, %159 : vector<8x128xf32>
    %161 = vector.extract_strided_slice %160 {offsets = [0, 0], sizes = [8, 32], strides = [1, 1]} : vector<8x128xf32> to vector<8x32xf32>
    %162 = vector.extract_strided_slice %160 {offsets = [0, 32], sizes = [8, 32], strides = [1, 1]} : vector<8x128xf32> to vector<8x32xf32>
    %163 = vector.extract_strided_slice %160 {offsets = [0, 96], sizes = [8, 32], strides = [1, 1]} : vector<8x128xf32> to vector<8x32xf32>
    %164 = vector.extract_strided_slice %155 {offsets = [0, 64], sizes = [8, 32], strides = [1, 1]} : vector<8x128xf32> to vector<8x32xf32>
    %165 = math.tanh %164 : vector<8x32xf32>
    %166 = arith.mulf %162, %129 : vector<8x32xf32>
    %167 = arith.mulf %161, %165 : vector<8x32xf32>
    %168 = arith.addf %166, %167 : vector<8x32xf32>
    %169 = math.tanh %168 : vector<8x32xf32>
    %170 = arith.mulf %163, %169 : vector<8x32xf32>
    %c24 = arith.constant 24 : index
    %c0_35 = arith.constant 0 : index
    %171 = vector.load %arg9[%c24, %c0_35] : memref<64x32xf32, #tpu.memory_space<vmem>>, vector<8x32xf32>
    tpu.vector_store %arg9[%c24, %c0_35], %170 {strides = array<i32>} : memref<64x32xf32, #tpu.memory_space<vmem>>, vector<8x32xf32>,
    %172 = vector.extract_strided_slice %6 {offsets = [32, 0], sizes = [8, 128], strides = [1, 1]} : vector<64x128xf32> to vector<8x128xf32>
    %173 = arith.truncf %151 : vector<8x32xf32> to vector<8x32xbf16>
    %cst_36 = arith.constant dense<0.000000e+00> : vector<8x128xf32>
    %174 = tpu.matmul %173, %7, %cst_36 {dimension_numbers = #tpu.dot_dimension_numbers<[1], [0], [0], [1], [0, 0, 1, 1], [], []>} : vector<8x32xbf16>, vector<32x128xbf16>, vector<8x128xf32> -> vector<8x128xf32>
    %175 = arith.addf %172, %174 : vector<8x128xf32>
    %176 = arith.negf %175 : vector<8x128xf32>
    %177 = math.exp %176 : vector<8x128xf32>
    %cst_37 = arith.constant 1.000000e+00 : f32
    %178 = vector.broadcast %cst_37 : f32 to vector<8x128xf32>
    %179 = arith.addf %178, %177 : vector<8x128xf32>
    %180 = arith.divf %178, %179 : vector<8x128xf32>
    %181 = vector.extract_strided_slice %180 {offsets = [0, 0], sizes = [8, 32], strides = [1, 1]} : vector<8x128xf32> to vector<8x32xf32>
    %182 = vector.extract_strided_slice %180 {offsets = [0, 32], sizes = [8, 32], strides = [1, 1]} : vector<8x128xf32> to vector<8x32xf32>
    %183 = vector.extract_strided_slice %180 {offsets = [0, 96], sizes = [8, 32], strides = [1, 1]} : vector<8x128xf32> to vector<8x32xf32>
    %184 = vector.extract_strided_slice %175 {offsets = [0, 64], sizes = [8, 32], strides = [1, 1]} : vector<8x128xf32> to vector<8x32xf32>
    %185 = math.tanh %184 : vector<8x32xf32>
    %186 = arith.mulf %182, %149 : vector<8x32xf32>
    %187 = arith.mulf %181, %185 : vector<8x32xf32>
    %188 = arith.addf %186, %187 : vector<8x32xf32>
    %189 = math.tanh %188 : vector<8x32xf32>
    %190 = arith.mulf %183, %189 : vector<8x32xf32>
    %191 = tpu.concatenate %190, %170 in 1 : vector<8x32xf32>, vector<8x32xf32> -> vector<8x64xf32>
    %192 = arith.truncf %191 : vector<8x64xf32> to vector<8x64xbf16>
    %cst_38 = arith.constant dense<0.000000e+00> : vector<8x128xf32>
    %193 = tpu.matmul %192, %8, %cst_38 {dimension_numbers = #tpu.dot_dimension_numbers<[1], [0], [0], [1], [0, 0, 1, 1], [], []>} : vector<8x64xbf16>, vector<64x128xbf16>, vector<8x128xf32> -> vector<8x128xf32>
    %194 = arith.addf %193, %11 : vector<8x128xf32>
    %195 = arith.negf %194 : vector<8x128xf32>
    %196 = math.exp %195 : vector<8x128xf32>
    %cst_39 = arith.constant 1.000000e+00 : f32
    %197 = vector.broadcast %cst_39 : f32 to vector<8x128xf32>
    %198 = arith.addf %197, %196 : vector<8x128xf32>
    %199 = arith.divf %197, %198 : vector<8x128xf32>
    %200 = vector.extract_strided_slice %199 {offsets = [0, 0], sizes = [8, 32], strides = [1, 1]} : vector<8x128xf32> to vector<8x32xf32>
    %201 = vector.extract_strided_slice %199 {offsets = [0, 32], sizes = [8, 32], strides = [1, 1]} : vector<8x128xf32> to vector<8x32xf32>
    %202 = vector.extract_strided_slice %199 {offsets = [0, 96], sizes = [8, 32], strides = [1, 1]} : vector<8x128xf32> to vector<8x32xf32>
    %203 = vector.extract_strided_slice %194 {offsets = [0, 64], sizes = [8, 32], strides = [1, 1]} : vector<8x128xf32> to vector<8x32xf32>
    %204 = math.tanh %203 : vector<8x32xf32>
    %205 = arith.mulf %201, %168 : vector<8x32xf32>
    %206 = arith.mulf %200, %204 : vector<8x32xf32>
    %207 = arith.addf %205, %206 : vector<8x32xf32>
    %208 = math.tanh %207 : vector<8x32xf32>
    %209 = arith.mulf %202, %208 : vector<8x32xf32>
    %c32 = arith.constant 32 : index
    %c0_40 = arith.constant 0 : index
    %210 = vector.load %arg9[%c32, %c0_40] : memref<64x32xf32, #tpu.memory_space<vmem>>, vector<8x32xf32>
    tpu.vector_store %arg9[%c32, %c0_40], %209 {strides = array<i32>} : memref<64x32xf32, #tpu.memory_space<vmem>>, vector<8x32xf32>,
    %211 = vector.extract_strided_slice %6 {offsets = [40, 0], sizes = [8, 128], strides = [1, 1]} : vector<64x128xf32> to vector<8x128xf32>
    %212 = arith.truncf %190 : vector<8x32xf32> to vector<8x32xbf16>
    %cst_41 = arith.constant dense<0.000000e+00> : vector<8x128xf32>
    %213 = tpu.matmul %212, %7, %cst_41 {dimension_numbers = #tpu.dot_dimension_numbers<[1], [0], [0], [1], [0, 0, 1, 1], [], []>} : vector<8x32xbf16>, vector<32x128xbf16>, vector<8x128xf32> -> vector<8x128xf32>
    %214 = arith.addf %211, %213 : vector<8x128xf32>
    %215 = arith.negf %214 : vector<8x128xf32>
    %216 = math.exp %215 : vector<8x128xf32>
    %cst_42 = arith.constant 1.000000e+00 : f32
    %217 = vector.broadcast %cst_42 : f32 to vector<8x128xf32>
    %218 = arith.addf %217, %216 : vector<8x128xf32>
    %219 = arith.divf %217, %218 : vector<8x128xf32>
    %220 = vector.extract_strided_slice %219 {offsets = [0, 0], sizes = [8, 32], strides = [1, 1]} : vector<8x128xf32> to vector<8x32xf32>
    %221 = vector.extract_strided_slice %219 {offsets = [0, 32], sizes = [8, 32], strides = [1, 1]} : vector<8x128xf32> to vector<8x32xf32>
    %222 = vector.extract_strided_slice %219 {offsets = [0, 96], sizes = [8, 32], strides = [1, 1]} : vector<8x128xf32> to vector<8x32xf32>
    %223 = vector.extract_strided_slice %214 {offsets = [0, 64], sizes = [8, 32], strides = [1, 1]} : vector<8x128xf32> to vector<8x32xf32>
    %224 = math.tanh %223 : vector<8x32xf32>
    %225 = arith.mulf %221, %188 : vector<8x32xf32>
    %226 = arith.mulf %220, %224 : vector<8x32xf32>
    %227 = arith.addf %225, %226 : vector<8x32xf32>
    %228 = math.tanh %227 : vector<8x32xf32>
    %229 = arith.mulf %222, %228 : vector<8x32xf32>
    %230 = tpu.concatenate %229, %209 in 1 : vector<8x32xf32>, vector<8x32xf32> -> vector<8x64xf32>
    %231 = arith.truncf %230 : vector<8x64xf32> to vector<8x64xbf16>
    %cst_43 = arith.constant dense<0.000000e+00> : vector<8x128xf32>
    %232 = tpu.matmul %231, %8, %cst_43 {dimension_numbers = #tpu.dot_dimension_numbers<[1], [0], [0], [1], [0, 0, 1, 1], [], []>} : vector<8x64xbf16>, vector<64x128xbf16>, vector<8x128xf32> -> vector<8x128xf32>
    %233 = arith.addf %232, %11 : vector<8x128xf32>
    %234 = arith.negf %233 : vector<8x128xf32>
    %235 = math.exp %234 : vector<8x128xf32>
    %cst_44 = arith.constant 1.000000e+00 : f32
    %236 = vector.broadcast %cst_44 : f32 to vector<8x128xf32>
    %237 = arith.addf %236, %235 : vector<8x128xf32>
    %238 = arith.divf %236, %237 : vector<8x128xf32>
    %239 = vector.extract_strided_slice %238 {offsets = [0, 0], sizes = [8, 32], strides = [1, 1]} : vector<8x128xf32> to vector<8x32xf32>
    %240 = vector.extract_strided_slice %238 {offsets = [0, 32], sizes = [8, 32], strides = [1, 1]} : vector<8x128xf32> to vector<8x32xf32>
    %241 = vector.extract_strided_slice %238 {offsets = [0, 96], sizes = [8, 32], strides = [1, 1]} : vector<8x128xf32> to vector<8x32xf32>
    %242 = vector.extract_strided_slice %233 {offsets = [0, 64], sizes = [8, 32], strides = [1, 1]} : vector<8x128xf32> to vector<8x32xf32>
    %243 = math.tanh %242 : vector<8x32xf32>
    %244 = arith.mulf %240, %207 : vector<8x32xf32>
    %245 = arith.mulf %239, %243 : vector<8x32xf32>
    %246 = arith.addf %244, %245 : vector<8x32xf32>
    %247 = math.tanh %246 : vector<8x32xf32>
    %248 = arith.mulf %241, %247 : vector<8x32xf32>
    %c40 = arith.constant 40 : index
    %c0_45 = arith.constant 0 : index
    %249 = vector.load %arg9[%c40, %c0_45] : memref<64x32xf32, #tpu.memory_space<vmem>>, vector<8x32xf32>
    tpu.vector_store %arg9[%c40, %c0_45], %248 {strides = array<i32>} : memref<64x32xf32, #tpu.memory_space<vmem>>, vector<8x32xf32>,
    %250 = vector.extract_strided_slice %6 {offsets = [48, 0], sizes = [8, 128], strides = [1, 1]} : vector<64x128xf32> to vector<8x128xf32>
    %251 = arith.truncf %229 : vector<8x32xf32> to vector<8x32xbf16>
    %cst_46 = arith.constant dense<0.000000e+00> : vector<8x128xf32>
    %252 = tpu.matmul %251, %7, %cst_46 {dimension_numbers = #tpu.dot_dimension_numbers<[1], [0], [0], [1], [0, 0, 1, 1], [], []>} : vector<8x32xbf16>, vector<32x128xbf16>, vector<8x128xf32> -> vector<8x128xf32>
    %253 = arith.addf %250, %252 : vector<8x128xf32>
    %254 = arith.negf %253 : vector<8x128xf32>
    %255 = math.exp %254 : vector<8x128xf32>
    %cst_47 = arith.constant 1.000000e+00 : f32
    %256 = vector.broadcast %cst_47 : f32 to vector<8x128xf32>
    %257 = arith.addf %256, %255 : vector<8x128xf32>
    %258 = arith.divf %256, %257 : vector<8x128xf32>
    %259 = vector.extract_strided_slice %258 {offsets = [0, 0], sizes = [8, 32], strides = [1, 1]} : vector<8x128xf32> to vector<8x32xf32>
    %260 = vector.extract_strided_slice %258 {offsets = [0, 32], sizes = [8, 32], strides = [1, 1]} : vector<8x128xf32> to vector<8x32xf32>
    %261 = vector.extract_strided_slice %258 {offsets = [0, 96], sizes = [8, 32], strides = [1, 1]} : vector<8x128xf32> to vector<8x32xf32>
    %262 = vector.extract_strided_slice %253 {offsets = [0, 64], sizes = [8, 32], strides = [1, 1]} : vector<8x128xf32> to vector<8x32xf32>
    %263 = math.tanh %262 : vector<8x32xf32>
    %264 = arith.mulf %260, %227 : vector<8x32xf32>
    %265 = arith.mulf %259, %263 : vector<8x32xf32>
    %266 = arith.addf %264, %265 : vector<8x32xf32>
    %267 = math.tanh %266 : vector<8x32xf32>
    %268 = arith.mulf %261, %267 : vector<8x32xf32>
    %269 = tpu.concatenate %268, %248 in 1 : vector<8x32xf32>, vector<8x32xf32> -> vector<8x64xf32>
    %270 = arith.truncf %269 : vector<8x64xf32> to vector<8x64xbf16>
    %cst_48 = arith.constant dense<0.000000e+00> : vector<8x128xf32>
    %271 = tpu.matmul %270, %8, %cst_48 {dimension_numbers = #tpu.dot_dimension_numbers<[1], [0], [0], [1], [0, 0, 1, 1], [], []>} : vector<8x64xbf16>, vector<64x128xbf16>, vector<8x128xf32> -> vector<8x128xf32>
    %272 = arith.addf %271, %11 : vector<8x128xf32>
    %273 = arith.negf %272 : vector<8x128xf32>
    %274 = math.exp %273 : vector<8x128xf32>
    %cst_49 = arith.constant 1.000000e+00 : f32
    %275 = vector.broadcast %cst_49 : f32 to vector<8x128xf32>
    %276 = arith.addf %275, %274 : vector<8x128xf32>
    %277 = arith.divf %275, %276 : vector<8x128xf32>
    %278 = vector.extract_strided_slice %277 {offsets = [0, 0], sizes = [8, 32], strides = [1, 1]} : vector<8x128xf32> to vector<8x32xf32>
    %279 = vector.extract_strided_slice %277 {offsets = [0, 32], sizes = [8, 32], strides = [1, 1]} : vector<8x128xf32> to vector<8x32xf32>
    %280 = vector.extract_strided_slice %277 {offsets = [0, 96], sizes = [8, 32], strides = [1, 1]} : vector<8x128xf32> to vector<8x32xf32>
    %281 = vector.extract_strided_slice %272 {offsets = [0, 64], sizes = [8, 32], strides = [1, 1]} : vector<8x128xf32> to vector<8x32xf32>
    %282 = math.tanh %281 : vector<8x32xf32>
    %283 = arith.mulf %279, %246 : vector<8x32xf32>
    %284 = arith.mulf %278, %282 : vector<8x32xf32>
    %285 = arith.addf %283, %284 : vector<8x32xf32>
    %286 = math.tanh %285 : vector<8x32xf32>
    %287 = arith.mulf %280, %286 : vector<8x32xf32>
    %c48 = arith.constant 48 : index
    %c0_50 = arith.constant 0 : index
    %288 = vector.load %arg9[%c48, %c0_50] : memref<64x32xf32, #tpu.memory_space<vmem>>, vector<8x32xf32>
    tpu.vector_store %arg9[%c48, %c0_50], %287 {strides = array<i32>} : memref<64x32xf32, #tpu.memory_space<vmem>>, vector<8x32xf32>,
    %289 = vector.extract_strided_slice %6 {offsets = [56, 0], sizes = [8, 128], strides = [1, 1]} : vector<64x128xf32> to vector<8x128xf32>
    %290 = arith.truncf %268 : vector<8x32xf32> to vector<8x32xbf16>
    %cst_51 = arith.constant dense<0.000000e+00> : vector<8x128xf32>
    %291 = tpu.matmul %290, %7, %cst_51 {dimension_numbers = #tpu.dot_dimension_numbers<[1], [0], [0], [1], [0, 0, 1, 1], [], []>} : vector<8x32xbf16>, vector<32x128xbf16>, vector<8x128xf32> -> vector<8x128xf32>
    %292 = arith.addf %289, %291 : vector<8x128xf32>
    %293 = arith.negf %292 : vector<8x128xf32>
    %294 = math.exp %293 : vector<8x128xf32>
    %cst_52 = arith.constant 1.000000e+00 : f32
    %295 = vector.broadcast %cst_52 : f32 to vector<8x128xf32>
    %296 = arith.addf %295, %294 : vector<8x128xf32>
    %297 = arith.divf %295, %296 : vector<8x128xf32>
    %298 = vector.extract_strided_slice %297 {offsets = [0, 0], sizes = [8, 32], strides = [1, 1]} : vector<8x128xf32> to vector<8x32xf32>
    %299 = vector.extract_strided_slice %297 {offsets = [0, 32], sizes = [8, 32], strides = [1, 1]} : vector<8x128xf32> to vector<8x32xf32>
    %300 = vector.extract_strided_slice %297 {offsets = [0, 96], sizes = [8, 32], strides = [1, 1]} : vector<8x128xf32> to vector<8x32xf32>
    %301 = vector.extract_strided_slice %292 {offsets = [0, 64], sizes = [8, 32], strides = [1, 1]} : vector<8x128xf32> to vector<8x32xf32>
    %302 = math.tanh %301 : vector<8x32xf32>
    %303 = arith.mulf %299, %266 : vector<8x32xf32>
    %304 = arith.mulf %298, %302 : vector<8x32xf32>
    %305 = arith.addf %303, %304 : vector<8x32xf32>
    %306 = math.tanh %305 : vector<8x32xf32>
    %307 = arith.mulf %300, %306 : vector<8x32xf32>
    %308 = tpu.concatenate %307, %287 in 1 : vector<8x32xf32>, vector<8x32xf32> -> vector<8x64xf32>
    %309 = arith.truncf %308 : vector<8x64xf32> to vector<8x64xbf16>
    %cst_53 = arith.constant dense<0.000000e+00> : vector<8x128xf32>
    %310 = tpu.matmul %309, %8, %cst_53 {dimension_numbers = #tpu.dot_dimension_numbers<[1], [0], [0], [1], [0, 0, 1, 1], [], []>} : vector<8x64xbf16>, vector<64x128xbf16>, vector<8x128xf32> -> vector<8x128xf32>
    %311 = arith.addf %310, %11 : vector<8x128xf32>
    %312 = arith.negf %311 : vector<8x128xf32>
    %313 = math.exp %312 : vector<8x128xf32>
    %cst_54 = arith.constant 1.000000e+00 : f32
    %314 = vector.broadcast %cst_54 : f32 to vector<8x128xf32>
    %315 = arith.addf %314, %313 : vector<8x128xf32>
    %316 = arith.divf %314, %315 : vector<8x128xf32>
    %317 = vector.extract_strided_slice %316 {offsets = [0, 0], sizes = [8, 32], strides = [1, 1]} : vector<8x128xf32> to vector<8x32xf32>
    %318 = vector.extract_strided_slice %316 {offsets = [0, 32], sizes = [8, 32], strides = [1, 1]} : vector<8x128xf32> to vector<8x32xf32>
    %319 = vector.extract_strided_slice %316 {offsets = [0, 96], sizes = [8, 32], strides = [1, 1]} : vector<8x128xf32> to vector<8x32xf32>
    %320 = vector.extract_strided_slice %311 {offsets = [0, 64], sizes = [8, 32], strides = [1, 1]} : vector<8x128xf32> to vector<8x32xf32>
    %321 = math.tanh %320 : vector<8x32xf32>
    %322 = arith.mulf %318, %285 : vector<8x32xf32>
    %323 = arith.mulf %317, %321 : vector<8x32xf32>
    %324 = arith.addf %322, %323 : vector<8x32xf32>
    %325 = math.tanh %324 : vector<8x32xf32>
    %326 = arith.mulf %319, %325 : vector<8x32xf32>
    %c56 = arith.constant 56 : index
    %c0_55 = arith.constant 0 : index
    %327 = vector.load %arg9[%c56, %c0_55] : memref<64x32xf32, #tpu.memory_space<vmem>>, vector<8x32xf32>
    tpu.vector_store %arg9[%c56, %c0_55], %326 {strides = array<i32>} : memref<64x32xf32, #tpu.memory_space<vmem>>, vector<8x32xf32>,
    %c0_56 = arith.constant 0 : index
    %c0_57 = arith.constant 0 : index
    %328 = vector.load %arg9[%c0_56, %c0_57] : memref<64x32xf32, #tpu.memory_space<vmem>>, vector<64x32xf32>
    %329 = arith.truncf %328 : vector<64x32xf32> to vector<64x32xbf16>
    %c0_58 = arith.constant 0 : index
    %c0_59 = arith.constant 0 : index
    %330 = vector.load %arg6[%c0_58, %c0_59] : memref<32x128xbf16, #tpu.memory_space<vmem>>, vector<32x128xbf16>
    %cst_60 = arith.constant dense<0.000000e+00> : vector<64x128xf32>
    %331 = tpu.matmul %329, %330, %cst_60 {dimension_numbers = #tpu.dot_dimension_numbers<[1], [0], [0], [1], [0, 0, 1, 1], [], []>} : vector<64x32xbf16>, vector<32x128xbf16>, vector<64x128xf32> -> vector<64x128xf32>
    %c0_61 = arith.constant 0 : index
    %c0_62 = arith.constant 0 : index
    %332 = vector.load %arg7[%c0_61, %c0_62] : memref<1x128xf32, #tpu.memory_space<vmem>>, vector<1x128xf32>
    %333 = vector.broadcast %332 : vector<1x128xf32> to vector<64x128xf32>
    %334 = arith.addf %331, %333 : vector<64x128xf32>
    %c0_63 = arith.constant 0 : index
    %c0_64 = arith.constant 0 : index
    %335 = vector.load %arg8[%c0_63, %c0_64] : memref<64x128xf32, #tpu.memory_space<vmem>>, vector<64x128xf32>
    tpu.vector_store %arg8[%c0_63, %c0_64], %334 {strides = array<i32>} : memref<64x128xf32, #tpu.memory_space<vmem>>, vector<64x128xf32>,
    return
  }
}

</mosaic_0001>

<llo_original>
// kernel: tpu_custom_call.1
$region0: #{tpu_custom_call.1}
  #allocation0 [shape = 'u32[]', space=smem, size = 0x4, offset = 0x4, fixed_abs, tag = 'smem constant byte address 0x4 - core index']
  #allocation1 [shape = 'u32[144,128]{1,0:T(1,128)}', space=vmem, size = 0x12000, scoped, tag = 'internal scratch']
  #allocation2 [shape = 'f32[64,32]{1,0:T(8,128)}', space=vmem, size = 0x8000, scoped, tag = 'scratch operand']
  %s0 = inlined_call_operand.vmem [shape: bf16[64,8], index: 0, kind: input, shape index: {}]
  %s1 = inlined_call_operand.hbm [shape: bf16[8,128], index: 1, kind: input, shape index: {}]
  %s2 = inlined_call_operand.hbm [shape: bf16[32,128], index: 2, kind: input, shape index: {}]
  %s3 = inlined_call_operand.vmem [shape: bf16[64,128], index: 3, kind: input, shape index: {}]
  %s4 = inlined_call_operand.vmem [shape: f32[1,128], index: 4, kind: input, shape index: {}]
  %s5 = inlined_call_operand.vmem [shape: f32[1,128], index: 5, kind: input, shape index: {}]
  %s6 = inlined_call_operand.vmem [shape: bf16[32,128], index: 6, kind: input, shape index: {}]
  %s7 = inlined_call_operand.vmem [shape: f32[1,128], index: 7, kind: input, shape index: {}]
  %s8 = inlined_call_operand.hbm [shape: f32[64,128], index: 8, kind: output, shape index: {}]
  %s9 = sld [smem:[#allocation0]]
  $region50: #{tpu_custom_call.1} parent=0
    _
  %s11 = ssub.s32 1, %s9
  %s12 = scalar_select 0, %s11, %s9
  $region1: #{tpu_custom_call.1} parent=0
    #allocation3 [shape = 'u8[2048]{0}', space=vmem, size = 0x800, scoped, tag = 'input window, operand 1, single buffered']
    #allocation4 [shape = 's32[1]{0}', space=sflag, size = 0x4, scoped, tag = 'scoped memory for tpu_custom_call.1']
    #allocation5 [shape = 's32[1]{0}', space=sflag, size = 0x4, scoped, tag = 'scoped memory for tpu_custom_call.1']
    #allocation6 [shape = 'u8[8192]{0}', space=vmem, size = 0x2000, scoped, tag = 'input window, operand 2, single buffered']
    #allocation7 [shape = 's32[1]{0}', space=sflag, size = 0x4, scoped, tag = 'scoped memory for tpu_custom_call.1']
    #allocation8 [shape = 'u8[32768]{0}', space=vmem, size = 0x8000, scoped, tag = 'output window, operand 0, single buffered']
    %13 = vsyncpa [#allocation4], 0
    %14 = vsyncpa [#allocation7], 0
    %15 = vsyncpa [#allocation5], 0
    // Predicated region
    $region2: #{tpu_custom_call.1} parent=1 // pred_check
      _
    $region3: #{tpu_custom_call.1} parent=1 // pred_check_branch
      %17 = sbr.rel (0) target = $region5
    $region4: #{tpu_custom_call.1} parent=1 // pred_region
      _
    $region5: #{tpu_custom_call.1} parent=1 // pred_fallthru
      _
    // Predicated region
    $region6: #{tpu_custom_call.1} parent=1 // pred_check
      _
    $region7: #{tpu_custom_call.1} parent=1 // pred_check_branch
      %19 = sbr.rel (0) target = $region9
    $region8: #{tpu_custom_call.1} parent=1 // pred_region
      %s21 = ssub.s32 64, 64
      %22 = vsyncadd [#allocation4], %s21
      %s24 = sshll.u32 [#allocation3], 4
      %s25 = int_to_ptr.vmem [resolvable:$true] %s24
      %27 = dma.hbm_to_vmem [thread:$0]  %s1, 64, %s25, [#allocation4]
    $region9: #{tpu_custom_call.1} parent=1 // pred_fallthru
      _
    // Predicated region
    $region10: #{tpu_custom_call.1} parent=1 // pred_check
      _
    $region11: #{tpu_custom_call.1} parent=1 // pred_check_branch
      %29 = sbr.rel (0) target = $region13
    $region12: #{tpu_custom_call.1} parent=1 // pred_region
      %s31 = ssub.s32 256, 256
      %32 = vsyncadd [#allocation7], %s31
      %s33 = sshll.u32 [#allocation6], 4
      %s34 = int_to_ptr.vmem [resolvable:$true] %s33
      %39 = dma.hbm_to_vmem [thread:$0]  %s2, 256, %s34, [#allocation7], 64, 64, 4
    $region13: #{tpu_custom_call.1} parent=1 // pred_fallthru
      _
    // Predicated region
    $region14: #{tpu_custom_call.1} parent=1 // pred_check
      _
    $region15: #{tpu_custom_call.1} parent=1 // pred_check_branch
      %41 = sbr.rel (0) target = $region17
    $region16: #{tpu_custom_call.1} parent=1 // pred_region
      _
    $region17: #{tpu_custom_call.1} parent=1 // pred_fallthru
      _
    // Predicated region
    $region18: #{tpu_custom_call.1} parent=1 // pred_check
      _
    $region19: #{tpu_custom_call.1} parent=1 // pred_check_branch
      %43 = sbr.rel (0) target = $region21
    $region20: #{tpu_custom_call.1} parent=1 // pred_region
      _
    $region21: #{tpu_custom_call.1} parent=1 // pred_fallthru
      _
    // Predicated region
    $region22: #{tpu_custom_call.1} parent=1 // pred_check
      _
    $region23: #{tpu_custom_call.1} parent=1 // pred_check_branch
      %45 = sbr.rel (0) target = $region25
    $region24: #{tpu_custom_call.1} parent=1 // pred_region
      _
    $region25: #{tpu_custom_call.1} parent=1 // pred_fallthru
      _
    // Predicated region
    $region26: #{tpu_custom_call.1} parent=1 // pred_check
      _
    $region27: #{tpu_custom_call.1} parent=1 // pred_check_branch
      %47 = sbr.rel (0) target = $region29
    $region28: #{tpu_custom_call.1} parent=1 // pred_region
      _
    $region29: #{tpu_custom_call.1} parent=1 // pred_fallthru
      _
    // Predicated region
    $region30: #{tpu_custom_call.1} parent=1 // pred_check
      _
    $region31: #{tpu_custom_call.1} parent=1 // pred_check_branch
      %49 = sbr.rel (0) target = $region33
    $region32: #{tpu_custom_call.1} parent=1 // pred_region
      _
    $region33: #{tpu_custom_call.1} parent=1 // pred_fallthru
      _
    // Predicated region
    $region34: #{tpu_custom_call.1} parent=1 // pred_check
      _
    $region35: #{tpu_custom_call.1} parent=1 // pred_check_branch
      %51 = sbr.rel (0) target = $region37
    $region36: #{tpu_custom_call.1} parent=1 // pred_region
      %52 = dma.done [#allocation4], 64
    $region37: #{tpu_custom_call.1} parent=1 // pred_fallthru
      _
    // Predicated region
    $region38: #{tpu_custom_call.1} parent=1 // pred_check
      _
    $region39: #{tpu_custom_call.1} parent=1 // pred_check_branch
      %54 = sbr.rel (0) target = $region41
    $region40: #{tpu_custom_call.1} parent=1 // pred_region
      %55 = dma.done [#allocation7], 256
    $region41: #{tpu_custom_call.1} parent=1 // pred_fallthru
      _
    %v57 = vld [vmem:[%s0] sm:$0xf]
    %v58 = vld [vmem:[%s0 + $0x4] sm:$0xf]
    %v59 = vld [vmem:[%s0 + $0x8] sm:$0xf]
    %v60 = vld [vmem:[%s0 + $0xc] sm:$0xf]
    %v61 = vld [vmem:[%s0 + $0x10] sm:$0xf]
    %v62 = vld [vmem:[%s0 + $0x14] sm:$0xf]
    %v63 = vld [vmem:[%s0 + $0x18] sm:$0xf]
    %v64 = vld [vmem:[%s0 + $0x1c] sm:$0xf]
    %v65 = vld [vmem:[#allocation3] sm:$0xf]
    %v66 = vld [vmem:[%s4] sm:$0x1]
    %v68 = vlaneseq
    %v69 = vshrl.u32 %v68, 7
    %v70 = vsub.s32 0, %v69
    %v71 = vrot.slane %v66, %v70
    %v81 = vunpack.c.l.b16 %v57
    %v82 = vunpack.c.l.b16 %v58
    %v83 = vunpack.c.l.b16 %v59
    %v84 = vunpack.c.l.b16 %v60
    %v85 = vunpack.c.l.b16 %v61
    %v86 = vunpack.c.l.b16 %v62
    %v87 = vunpack.c.l.b16 %v63
    %v88 = vunpack.c.l.b16 %v64
    %v89 = vpack.c.b16 %v82, %v81
    %v90 = vpack.c.b16 %v84, %v83
    %v91 = vpack.c.b16 %v86, %v85
    %v92 = vpack.c.b16 %v88, %v87
    %vm93 = vcmask 64512
    %v95 = vsel %vm93, %v89, 0
    %v98 = vsel %vm93, %v90, 0
    %v101 = vsel %vm93, %v91, 0
    %v104 = vsel %vm93, %v92, 0
    %vm106 = vcmask 1043456
    %v108 = vsel %vm106, %v65, 0
    %110 = vmatprep.subr.bf16.mxu0 0
    %111 = vmatpush1.bf16.msra.mxu0 %v108
    %112 = vmatprep.subr.bf16.mxu0 0
    %113 = vmatpush1.bf16.msra.mxu0 0
    %114 = vmatprep.subr.bf16.mxu0 0
    %115 = vmatpush1.bf16.msra.mxu0 0
    %116 = vmatprep.subr.bf16.mxu0 0
    %117 = vmatpush1.bf16.msra.mxu0 0
    %118 = vmatprep.subr.bf16.mxu0 0
    %119 = vmatpush1.bf16.msra.mxu0 0
    %120 = vmatprep.subr.bf16.mxu0 0
    %121 = vmatpush1.bf16.msra.mxu0 0
    %122 = vmatprep.subr.bf16.mxu0 0
    %123 = vmatpush1.bf16.msra.mxu0 0
    %124 = vmatprep.subr.bf16.mxu0 0
    %125 = vmatpush1.bf16.msra.mxu0 0
    %126 = vmatprep.subr.bf16.mxu0 0
    %127 = vmatpush1.bf16.msra.mxu0 0
    %128 = vmatprep.subr.bf16.mxu0 0
    %129 = vmatpush1.bf16.msra.mxu0 0
    %130 = vmatprep.subr.bf16.mxu0 0
    %131 = vmatpush1.bf16.msra.mxu0 0
    %132 = vmatprep.subr.bf16.mxu0 0
    %133 = vmatpush1.bf16.msra.mxu0 0
    %134 = vmatprep.subr.bf16.mxu0 0
    %135 = vmatpush1.bf16.msra.mxu0 0
    %136 = vmatprep.subr.bf16.mxu0 0
    %137 = vmatpush1.bf16.msra.mxu0 0
    %138 = vmatprep.subr.bf16.mxu0 0
    %139 = vmatpush1.bf16.msra.mxu0 0
    %140 = vmatprep.subr.bf16.mxu0 0
    %141 = vmatpush1.bf16.msra.mxu0 0
    %142 = vmatprep.mubr.bf16.mxu0 0
    %143 = vmatmul.mubr.bf16.gmra.mrb[0].mxu0 %v95
    %v144 = vpop.f32.mrb[0].mxu0
    %v145 = vadd.f32 %v71, %v144
    %v146 = vpop.f32.mrb[0].mxu0
    %v147 = vpop.f32.mrb[0].mxu0
    %v148 = vadd.f32 %v71, %v147
    %v149 = vpop.f32.mrb[0].mxu0
    %150 = vmatprep.mubr.bf16.mxu0 0
    %151 = vmatmul.mubr.bf16.gmra.mrb[0].mxu0 %v98
    %v152 = vpop.f32.mrb[0].mxu0
    %v153 = vadd.f32 %v71, %v152
    %v154 = vpop.f32.mrb[0].mxu0
    %v155 = vpop.f32.mrb[0].mxu0
    %v156 = vadd.f32 %v71, %v155
    %v157 = vpop.f32.mrb[0].mxu0
    %158 = vmatprep.mubr.bf16.mxu0 0
    %159 = vmatmul.mubr.bf16.gmra.mrb[0].mxu0 %v101
    %v160 = vpop.f32.mrb[0].mxu0
    %v161 = vadd.f32 %v71, %v160
    %v162 = vpop.f32.mrb[0].mxu0
    %v163 = vpop.f32.mrb[0].mxu0
    %v164 = vadd.f32 %v71, %v163
    %v165 = vpop.f32.mrb[0].mxu0
    %166 = vmatprep.mubr.bf16.mxu0 0
    %167 = vmatmul.mubr.bf16.gmra.mrb[0].mxu0 %v104
    %v168 = vpop.f32.mrb[0].mxu0
    %v169 = vadd.f32 %v71, %v168
    %v170 = vpop.f32.mrb[0].mxu0
    %v171 = vpop.f32.mrb[0].mxu0
    %v172 = vadd.f32 %v71, %v171
    %v173 = vpop.f32.mrb[0].mxu0
    %174 = vdwg.mxu0
    %v175 = vld [vmem:[#allocation6] sm:$0xf]
    %v176 = vld [vmem:[#allocation6 + $0x4] sm:$0xf]
    %v177 = vld [vmem:[#allocation6 + $0x8] sm:$0xf]
    %v178 = vld [vmem:[#allocation6 + $0xc] sm:$0xf]
    %v179 = vld [vmem:[%s3] sm:$0xf]
    %v180 = vld [vmem:[%s3 + $0x4] sm:$0xf]
    %v181 = vld [vmem:[%s3 + $0x8] sm:$0xf]
    %v182 = vld [vmem:[%s3 + $0xc] sm:$0xf]
    %v183 = vld [vmem:[%s3 + $0x10] sm:$0xf]
    %v184 = vld [vmem:[%s3 + $0x14] sm:$0xf]
    %v185 = vld [vmem:[%s3 + $0x18] sm:$0xf]
    %v186 = vld [vmem:[%s3 + $0x1c] sm:$0xf]
    %v187 = vld [vmem:[%s5] sm:$0x1]
    %v189 = vlaneseq
    %v190 = vshrl.u32 %v189, 7
    %v191 = vsub.s32 0, %v190
    %v192 = vrot.slane %v187, %v191
    %v198 = vunpack.c.l.b16 %v175
    %v199 = vunpack.c.l.b16 %v176
    %v200 = vunpack.c.l.b16 %v177
    %v201 = vunpack.c.l.b16 %v178
    %v202 = vpack.c.b16 %v199, %v198
    %v203 = vpack.c.b16 %v201, %v200
    %vm206 = vcmask 261120
    %v208 = vsel %vm206, 0, 0
    %210 = vmatprep.subr.bf16.mxu0 0
    %211 = vmatpush1.bf16.msra.mxu0 %v202
    %212 = vmatprep.subr.bf16.mxu0 0
    %213 = vmatpush1.bf16.msra.mxu0 %v203
    %214 = vmatprep.subr.bf16.mxu0 0
    %215 = vmatpush1.bf16.msra.mxu0 0
    %216 = vmatprep.subr.bf16.mxu0 0
    %217 = vmatpush1.bf16.msra.mxu0 0
    %218 = vmatprep.subr.bf16.mxu0 0
    %219 = vmatpush1.bf16.msra.mxu0 0
    %220 = vmatprep.subr.bf16.mxu0 0
    %221 = vmatpush1.bf16.msra.mxu0 0
    %222 = vmatprep.subr.bf16.mxu0 0
    %223 = vmatpush1.bf16.msra.mxu0 0
    %224 = vmatprep.subr.bf16.mxu0 0
    %225 = vmatpush1.bf16.msra.mxu0 0
    %226 = vmatprep.subr.bf16.mxu0 0
    %227 = vmatpush1.bf16.msra.mxu0 0
    %228 = vmatprep.subr.bf16.mxu0 0
    %229 = vmatpush1.bf16.msra.mxu0 0
    %230 = vmatprep.subr.bf16.mxu0 0
    %231 = vmatpush1.bf16.msra.mxu0 0
    %232 = vmatprep.subr.bf16.mxu0 0
    %233 = vmatpush1.bf16.msra.mxu0 0
    %234 = vmatprep.subr.bf16.mxu0 0
    %235 = vmatpush1.bf16.msra.mxu0 0
    %236 = vmatprep.subr.bf16.mxu0 0
    %237 = vmatpush1.bf16.msra.mxu0 0
    %238 = vmatprep.subr.bf16.mxu0 0
    %239 = vmatpush1.bf16.msra.mxu0 0
    %240 = vmatprep.subr.bf16.mxu0 0
    %241 = vmatpush1.bf16.msra.mxu0 0
    %242 = vmatprep.mubr.bf16.mxu0 0
    %243 = vmatmul.mubr.bf16.gmra.mrb[0].mxu0 %v208
    %v244 = vpop.f32.mrb[0].mxu0
    %v245 = vadd.f32 0.0, %v244
    %v246 = vpop.f32.mrb[0].mxu0
    %v247 = vpop.f32.mrb[0].mxu0
    %v248 = vpop.f32.mrb[0].mxu0
    %249 = vdwg.mxu0
    %v250 = vadd.f32 %v145, %v245
    %v251 = vxor.u32 %v250, 2147483648
    %v252 = vmul.f32 %v251, 1.442695
    %v253 = vpow.pop %v252
    %v254 = vadd.f32 %v253, 1.0
    %v255 = vrcp.pop %v254
    %v256 = vmul.f32 1.0, %v255
    %v257 = vtanh.pop %v250
    %v258 = vmul.f32 %v256, 0.0
    %260 = vrot.lane.b32.xlu0 %v257, 64
    %v261 = vpop.permute.xlu0 %260
    %v263 = vmul.f32 %v256, %v261
    %265 = vrot.lane.b32.xlu0 %v263, 32
    %v266 = vpop.permute.xlu0 %265
    %v268 = vadd.f32 %v258, %v266
    %v269 = vtanh.pop %v268
    %271 = vrot.lane.b32.xlu0 %v269, 64
    %v272 = vpop.permute.xlu0 %271
    %v274 = vmul.f32 %v256, %v272
    %276 = vrot.lane.b32.xlu0 %v274, 32
    %v277 = vpop.permute.xlu0 %276
    %v279 = vsel %vm206, %v277, 0.0
    %v280 = vpack.c.bf16 %v279, %v279
    %v289 = vunpack.c.l.b16 %v179
    %v290 = vunpack.c.l.b16 %v180
    %v291 = vunpack.c.l.b16 %v181
    %v292 = vunpack.c.l.b16 %v182
    %v293 = vunpack.c.l.b16 %v183
    %v294 = vunpack.c.l.b16 %v184
    %v295 = vunpack.c.l.b16 %v185
    %v296 = vunpack.c.l.b16 %v186
    %v297 = vpack.c.b16 %v290, %v289
    %v298 = vpack.c.b16 %v292, %v291
    %v299 = vpack.c.b16 %v294, %v293
    %v300 = vpack.c.b16 %v296, %v295
    %vm305 = vcmask 523264
    %v307 = vsel %vm305, %v280, 0
    %309 = vmatprep.subr.bf16.mxu0 0
    %310 = vmatpush1.bf16.msra.mxu0 %v297
    %311 = vmatprep.subr.bf16.mxu0 0
    %312 = vmatpush1.bf16.msra.mxu0 %v298
    %313 = vmatprep.subr.bf16.mxu0 0
    %314 = vmatpush1.bf16.msra.mxu0 %v299
    %315 = vmatprep.subr.bf16.mxu0 0
    %316 = vmatpush1.bf16.msra.mxu0 %v300
    %317 = vmatprep.subr.bf16.mxu0 0
    %318 = vmatpush1.bf16.msra.mxu0 0
    %319 = vmatprep.subr.bf16.mxu0 0
    %320 = vmatpush1.bf16.msra.mxu0 0
    %321 = vmatprep.subr.bf16.mxu0 0
    %322 = vmatpush1.bf16.msra.mxu0 0
    %323 = vmatprep.subr.bf16.mxu0 0
    %324 = vmatpush1.bf16.msra.mxu0 0
    %325 = vmatprep.subr.bf16.mxu0 0
    %326 = vmatpush1.bf16.msra.mxu0 0
    %327 = vmatprep.subr.bf16.mxu0 0
    %328 = vmatpush1.bf16.msra.mxu0 0
    %329 = vmatprep.subr.bf16.mxu0 0
    %330 = vmatpush1.bf16.msra.mxu0 0
    %331 = vmatprep.subr.bf16.mxu0 0
    %332 = vmatpush1.bf16.msra.mxu0 0
    %333 = vmatprep.subr.bf16.mxu0 0
    %334 = vmatpush1.bf16.msra.mxu0 0
    %335 = vmatprep.subr.bf16.mxu0 0
    %336 = vmatpush1.bf16.msra.mxu0 0
    %337 = vmatprep.subr.bf16.mxu0 0
    %338 = vmatpush1.bf16.msra.mxu0 0
    %339 = vmatprep.subr.bf16.mxu0 0
    %340 = vmatpush1.bf16.msra.mxu0 0
    %341 = vmatprep.mubr.bf16.mxu0 0
    %342 = vmatmul.mubr.bf16.gmra.mrb[0].mxu0 %v307
    %v343 = vpop.f32.mrb[0].mxu0
    %v344 = vadd.f32 %v192, %v343
    %v345 = vpop.f32.mrb[0].mxu0
    %v346 = vpop.f32.mrb[0].mxu0
    %v347 = vpop.f32.mrb[0].mxu0
    %348 = vdwg.mxu0
    %v349 = vxor.u32 %v344, 2147483648
    %v350 = vmul.f32 %v349, 1.442695
    %v351 = vpow.pop %v350
    %v352 = vadd.f32 %v351, 1.0
    %v353 = vrcp.pop %v352
    %v354 = vmul.f32 1.0, %v353
    %v355 = vtanh.pop %v344
    %v356 = vmul.f32 %v354, 0.0
    %358 = vrot.lane.b32.xlu0 %v355, 64
    %v359 = vpop.permute.xlu0 %358
    %v361 = vmul.f32 %v354, %v359
    %363 = vrot.lane.b32.xlu0 %v361, 32
    %v364 = vpop.permute.xlu0 %363
    %v366 = vadd.f32 %v356, %v364
    %v367 = vtanh.pop %v366
    %369 = vrot.lane.b32.xlu0 %v367, 64
    %v370 = vpop.permute.xlu0 %369
    %v372 = vmul.f32 %v354, %v370
    %374 = vrot.lane.b32.xlu0 %v372, 32
    %v375 = vpop.permute.xlu0 %374
    %377 = vst.msk [vmem:[#allocation2] sm:$0xff] %vm206, %v375
    %v378 = vpack.c.bf16 %v274, %v274
    %380 = vrot.lane.b32.xlu0 %v378, 32
    %v381 = vpop.permute.xlu0 %380
    %v383 = vsel %vm206, %v381, 0
    %385 = vmatprep.subr.bf16.mxu0 0
    %386 = vmatpush1.bf16.msra.mxu0 %v202
    %387 = vmatprep.subr.bf16.mxu0 0
    %388 = vmatpush1.bf16.msra.mxu0 %v203
    %389 = vmatprep.subr.bf16.mxu0 0
    %390 = vmatpush1.bf16.msra.mxu0 0
    %391 = vmatprep.subr.bf16.mxu0 0
    %392 = vmatpush1.bf16.msra.mxu0 0
    %393 = vmatprep.subr.bf16.mxu0 0
    %394 = vmatpush1.bf16.msra.mxu0 0
    %395 = vmatprep.subr.bf16.mxu0 0
    %396 = vmatpush1.bf16.msra.mxu0 0
    %397 = vmatprep.subr.bf16.mxu0 0
    %398 = vmatpush1.bf16.msra.mxu0 0
    %399 = vmatprep.subr.bf16.mxu0 0
    %400 = vmatpush1.bf16.msra.mxu0 0
    %401 = vmatprep.subr.bf16.mxu0 0
    %402 = vmatpush1.bf16.msra.mxu0 0
    %403 = vmatprep.subr.bf16.mxu0 0
    %404 = vmatpush1.bf16.msra.mxu0 0
    %405 = vmatprep.subr.bf16.mxu0 0
    %406 = vmatpush1.bf16.msra.mxu0 0
    %407 = vmatprep.subr.bf16.mxu0 0
    %408 = vmatpush1.bf16.msra.mxu0 0
    %409 = vmatprep.subr.bf16.mxu0 0
    %410 = vmatpush1.bf16.msra.mxu0 0
    %411 = vmatprep.subr.bf16.mxu0 0
    %412 = vmatpush1.bf16.msra.mxu0 0
    %413 = vmatprep.subr.bf16.mxu0 0
    %414 = vmatpush1.bf16.msra.mxu0 0
    %415 = vmatprep.subr.bf16.mxu0 0
    %416 = vmatpush1.bf16.msra.mxu0 0
    %417 = vmatprep.mubr.bf16.mxu0 0
    %418 = vmatmul.mubr.bf16.gmra.mrb[0].mxu0 %v383
    %v419 = vpop.f32.mrb[0].mxu0
    %v420 = vadd.f32 0.0, %v419
    %v421 = vpop.f32.mrb[0].mxu0
    %v422 = vpop.f32.mrb[0].mxu0
    %v423 = vpop.f32.mrb[0].mxu0
    %424 = vdwg.mxu0
    %v425 = vadd.f32 %v148, %v420
    %v426 = vxor.u32 %v425, 2147483648
    %v427 = vmul.f32 %v426, 1.442695
    %v428 = vpow.pop %v427
    %v429 = vadd.f32 %v428, 1.0
    %v430 = vrcp.pop %v429
    %v431 = vmul.f32 1.0, %v430
    %v432 = vtanh.pop %v425
    %v433 = vmul.f32 %v431, %v268
    %435 = vrot.lane.b32.xlu0 %v432, 64
    %v436 = vpop.permute.xlu0 %435
    %v438 = vmul.f32 %v431, %v436
    %440 = vrot.lane.b32.xlu0 %v438, 32
    %v441 = vpop.permute.xlu0 %440
    %v443 = vadd.f32 %v433, %v441
    %v444 = vtanh.pop %v443
    %446 = vrot.lane.b32.xlu0 %v444, 64
    %v447 = vpop.permute.xlu0 %446
    %v449 = vmul.f32 %v431, %v447
    %451 = vrot.lane.b32.xlu0 %v449, 32
    %v452 = vpop.permute.xlu0 %451
    %454 = vrot.lane.b32.xlu0 %v372, 64
    %v455 = vpop.permute.xlu0 %454
    %v457 = vsel %vm206, %v452, %v455
    %v458 = vpack.c.bf16 %v457, %v457
    %v460 = vsel %vm305, %v458, 0
    %462 = vmatprep.subr.bf16.mxu0 0
    %463 = vmatpush1.bf16.msra.mxu0 %v297
    %464 = vmatprep.subr.bf16.mxu0 0
    %465 = vmatpush1.bf16.msra.mxu0 %v298
    %466 = vmatprep.subr.bf16.mxu0 0
    %467 = vmatpush1.bf16.msra.mxu0 %v299
    %468 = vmatprep.subr.bf16.mxu0 0
    %469 = vmatpush1.bf16.msra.mxu0 %v300
    %470 = vmatprep.subr.bf16.mxu0 0
    %471 = vmatpush1.bf16.msra.mxu0 0
    %472 = vmatprep.subr.bf16.mxu0 0
    %473 = vmatpush1.bf16.msra.mxu0 0
    %474 = vmatprep.subr.bf16.mxu0 0
    %475 = vmatpush1.bf16.msra.mxu0 0
    %476 = vmatprep.subr.bf16.mxu0 0
    %477 = vmatpush1.bf16.msra.mxu0 0
    %478 = vmatprep.subr.bf16.mxu0 0
    %479 = vmatpush1.bf16.msra.mxu0 0
    %480 = vmatprep.subr.bf16.mxu0 0
    %481 = vmatpush1.bf16.msra.mxu0 0
    %482 = vmatprep.subr.bf16.mxu0 0
    %483 = vmatpush1.bf16.msra.mxu0 0
    %484 = vmatprep.subr.bf16.mxu0 0
    %485 = vmatpush1.bf16.msra.mxu0 0
    %486 = vmatprep.subr.bf16.mxu0 0
    %487 = vmatpush1.bf16.msra.mxu0 0
    %488 = vmatprep.subr.bf16.mxu0 0
    %489 = vmatpush1.bf16.msra.mxu0 0
    %490 = vmatprep.subr.bf16.mxu0 0
    %491 = vmatpush1.bf16.msra.mxu0 0
    %492 = vmatprep.subr.bf16.mxu0 0
    %493 = vmatpush1.bf16.msra.mxu0 0
    %494 = vmatprep.mubr.bf16.mxu0 0
    %495 = vmatmul.mubr.bf16.gmra.mrb[0].mxu0 %v460
    %v496 = vpop.f32.mrb[0].mxu0
    %v497 = vadd.f32 %v192, %v496
    %v498 = vpop.f32.mrb[0].mxu0
    %v499 = vpop.f32.mrb[0].mxu0
    %v500 = vpop.f32.mrb[0].mxu0
    %501 = vdwg.mxu0
    %v502 = vxor.u32 %v497, 2147483648
    %v503 = vmul.f32 %v502, 1.442695
    %v504 = vpow.pop %v503
    %v505 = vadd.f32 %v504, 1.0
    %v506 = vrcp.pop %v505
    %v507 = vmul.f32 1.0, %v506
    %v508 = vtanh.pop %v497
    %v509 = vmul.f32 %v507, %v366
    %511 = vrot.lane.b32.xlu0 %v508, 64
    %v512 = vpop.permute.xlu0 %511
    %v514 = vmul.f32 %v507, %v512
    %516 = vrot.lane.b32.xlu0 %v514, 32
    %v517 = vpop.permute.xlu0 %516
    %v519 = vadd.f32 %v509, %v517
    %v520 = vtanh.pop %v519
    %522 = vrot.lane.b32.xlu0 %v520, 64
    %v523 = vpop.permute.xlu0 %522
    %v525 = vmul.f32 %v507, %v523
    %527 = vrot.lane.b32.xlu0 %v525, 32
    %v528 = vpop.permute.xlu0 %527
    %530 = vst.msk [vmem:[#allocation2 + $0x8] sm:$0xff] %vm206, %v528
    %v531 = vpack.c.bf16 %v449, %v449
    %533 = vrot.lane.b32.xlu0 %v531, 32
    %v534 = vpop.permute.xlu0 %533
    %v536 = vsel %vm206, %v534, 0
    %538 = vmatprep.subr.bf16.mxu0 0
    %539 = vmatpush1.bf16.msra.mxu0 %v202
    %540 = vmatprep.subr.bf16.mxu0 0
    %541 = vmatpush1.bf16.msra.mxu0 %v203
    %542 = vmatprep.subr.bf16.mxu0 0
    %543 = vmatpush1.bf16.msra.mxu0 0
    %544 = vmatprep.subr.bf16.mxu0 0
    %545 = vmatpush1.bf16.msra.mxu0 0
    %546 = vmatprep.subr.bf16.mxu0 0
    %547 = vmatpush1.bf16.msra.mxu0 0
    %548 = vmatprep.subr.bf16.mxu0 0
    %549 = vmatpush1.bf16.msra.mxu0 0
    %550 = vmatprep.subr.bf16.mxu0 0
    %551 = vmatpush1.bf16.msra.mxu0 0
    %552 = vmatprep.subr.bf16.mxu0 0
    %553 = vmatpush1.bf16.msra.mxu0 0
    %554 = vmatprep.subr.bf16.mxu0 0
    %555 = vmatpush1.bf16.msra.mxu0 0
    %556 = vmatprep.subr.bf16.mxu0 0
    %557 = vmatpush1.bf16.msra.mxu0 0
    %558 = vmatprep.subr.bf16.mxu0 0
    %559 = vmatpush1.bf16.msra.mxu0 0
    %560 = vmatprep.subr.bf16.mxu0 0
    %561 = vmatpush1.bf16.msra.mxu0 0
    %562 = vmatprep.subr.bf16.mxu0 0
    %563 = vmatpush1.bf16.msra.mxu0 0
    %564 = vmatprep.subr.bf16.mxu0 0
    %565 = vmatpush1.bf16.msra.mxu0 0
    %566 = vmatprep.subr.bf16.mxu0 0
    %567 = vmatpush1.bf16.msra.mxu0 0
    %568 = vmatprep.subr.bf16.mxu0 0
    %569 = vmatpush1.bf16.msra.mxu0 0
    %570 = vmatprep.mubr.bf16.mxu0 0
    %571 = vmatmul.mubr.bf16.gmra.mrb[0].mxu0 %v536
    %v572 = vpop.f32.mrb[0].mxu0
    %v573 = vadd.f32 0.0, %v572
    %v574 = vpop.f32.mrb[0].mxu0
    %v575 = vpop.f32.mrb[0].mxu0
    %v576 = vpop.f32.mrb[0].mxu0
    %577 = vdwg.mxu0
    %v578 = vadd.f32 %v153, %v573
    %v579 = vxor.u32 %v578, 2147483648
    %v580 = vmul.f32 %v579, 1.442695
    %v581 = vpow.pop %v580
    %v582 = vadd.f32 %v581, 1.0
    %v583 = vrcp.pop %v582
    %v584 = vmul.f32 1.0, %v583
    %v585 = vtanh.pop %v578
    %v586 = vmul.f32 %v584, %v443
    %588 = vrot.lane.b32.xlu0 %v585, 64
    %v589 = vpop.permute.xlu0 %588
    %v591 = vmul.f32 %v584, %v589
    %593 = vrot.lane.b32.xlu0 %v591, 32
    %v594 = vpop.permute.xlu0 %593
    %v596 = vadd.f32 %v586, %v594
    %v597 = vtanh.pop %v596
    %599 = vrot.lane.b32.xlu0 %v597, 64
    %v600 = vpop.permute.xlu0 %599
    %v602 = vmul.f32 %v584, %v600
    %604 = vrot.lane.b32.xlu0 %v602, 32
    %v605 = vpop.permute.xlu0 %604
    %607 = vrot.lane.b32.xlu0 %v525, 64
    %v608 = vpop.permute.xlu0 %607
    %v610 = vsel %vm206, %v605, %v608
    %v611 = vpack.c.bf16 %v610, %v610
    %v613 = vsel %vm305, %v611, 0
    %615 = vmatprep.subr.bf16.mxu0 0
    %616 = vmatpush1.bf16.msra.mxu0 %v297
    %617 = vmatprep.subr.bf16.mxu0 0
    %618 = vmatpush1.bf16.msra.mxu0 %v298
    %619 = vmatprep.subr.bf16.mxu0 0
    %620 = vmatpush1.bf16.msra.mxu0 %v299
    %621 = vmatprep.subr.bf16.mxu0 0
    %622 = vmatpush1.bf16.msra.mxu0 %v300
    %623 = vmatprep.subr.bf16.mxu0 0
    %624 = vmatpush1.bf16.msra.mxu0 0
    %625 = vmatprep.subr.bf16.mxu0 0
    %626 = vmatpush1.bf16.msra.mxu0 0
    %627 = vmatprep.subr.bf16.mxu0 0
    %628 = vmatpush1.bf16.msra.mxu0 0
    %629 = vmatprep.subr.bf16.mxu0 0
    %630 = vmatpush1.bf16.msra.mxu0 0
    %631 = vmatprep.subr.bf16.mxu0 0
    %632 = vmatpush1.bf16.msra.mxu0 0
    %633 = vmatprep.subr.bf16.mxu0 0
    %634 = vmatpush1.bf16.msra.mxu0 0
    %635 = vmatprep.subr.bf16.mxu0 0
    %636 = vmatpush1.bf16.msra.mxu0 0
    %637 = vmatprep.subr.bf16.mxu0 0
    %638 = vmatpush1.bf16.msra.mxu0 0
    %639 = vmatprep.subr.bf16.mxu0 0
    %640 = vmatpush1.bf16.msra.mxu0 0
    %641 = vmatprep.subr.bf16.mxu0 0
    %642 = vmatpush1.bf16.msra.mxu0 0
    %643 = vmatprep.subr.bf16.mxu0 0
    %644 = vmatpush1.bf16.msra.mxu0 0
    %645 = vmatprep.subr.bf16.mxu0 0
    %646 = vmatpush1.bf16.msra.mxu0 0
    %647 = vmatprep.mubr.bf16.mxu0 0
    %648 = vmatmul.mubr.bf16.gmra.mrb[0].mxu0 %v613
    %v649 = vpop.f32.mrb[0].mxu0
    %v650 = vadd.f32 %v192, %v649
    %v651 = vpop.f32.mrb[0].mxu0
    %v652 = vpop.f32.mrb[0].mxu0
    %v653 = vpop.f32.mrb[0].mxu0
    %654 = vdwg.mxu0
    %v655 = vxor.u32 %v650, 2147483648
    %v656 = vmul.f32 %v655, 1.442695
    %v657 = vpow.pop %v656
    %v658 = vadd.f32 %v657, 1.0
    %v659 = vrcp.pop %v658
    %v660 = vmul.f32 1.0, %v659
    %v661 = vtanh.pop %v650
    %v662 = vmul.f32 %v660, %v519
    %664 = vrot.lane.b32.xlu0 %v661, 64
    %v665 = vpop.permute.xlu0 %664
    %v667 = vmul.f32 %v660, %v665
    %669 = vrot.lane.b32.xlu0 %v667, 32
    %v670 = vpop.permute.xlu0 %669
    %v672 = vadd.f32 %v662, %v670
    %v673 = vtanh.pop %v672
    %675 = vrot.lane.b32.xlu0 %v673, 64
    %v676 = vpop.permute.xlu0 %675
    %v678 = vmul.f32 %v660, %v676
    %680 = vrot.lane.b32.xlu0 %v678, 32
    %v681 = vpop.permute.xlu0 %680
    %683 = vst.msk [vmem:[#allocation2 + $0x10] sm:$0xff] %vm206, %v681
    %v684 = vpack.c.bf16 %v602, %v602
    %686 = vrot.lane.b32.xlu0 %v684, 32
    %v687 = vpop.permute.xlu0 %686
    %v689 = vsel %vm206, %v687, 0
    %691 = vmatprep.subr.bf16.mxu0 0
    %692 = vmatpush1.bf16.msra.mxu0 %v202
    %693 = vmatprep.subr.bf16.mxu0 0
    %694 = vmatpush1.bf16.msra.mxu0 %v203
    %695 = vmatprep.subr.bf16.mxu0 0
    %696 = vmatpush1.bf16.msra.mxu0 0
    %697 = vmatprep.subr.bf16.mxu0 0
    %698 = vmatpush1.bf16.msra.mxu0 0
    %699 = vmatprep.subr.bf16.mxu0 0
    %700 = vmatpush1.bf16.msra.mxu0 0
    %701 = vmatprep.subr.bf16.mxu0 0
    %702 = vmatpush1.bf16.msra.mxu0 0
    %703 = vmatprep.subr.bf16.mxu0 0
    %704 = vmatpush1.bf16.msra.mxu0 0
    %705 = vmatprep.subr.bf16.mxu0 0
    %706 = vmatpush1.bf16.msra.mxu0 0
    %707 = vmatprep.subr.bf16.mxu0 0
    %708 = vmatpush1.bf16.msra.mxu0 0
    %709 = vmatprep.subr.bf16.mxu0 0
    %710 = vmatpush1.bf16.msra.mxu0 0
    %711 = vmatprep.subr.bf16.mxu0 0
    %712 = vmatpush1.bf16.msra.mxu0 0
    %713 = vmatprep.subr.bf16.mxu0 0
    %714 = vmatpush1.bf16.msra.mxu0 0
    %715 = vmatprep.subr.bf16.mxu0 0
    %716 = vmatpush1.bf16.msra.mxu0 0
    %717 = vmatprep.subr.bf16.mxu0 0
    %718 = vmatpush1.bf16.msra.mxu0 0
    %719 = vmatprep.subr.bf16.mxu0 0
    %720 = vmatpush1.bf16.msra.mxu0 0
    %721 = vmatprep.subr.bf16.mxu0 0
    %722 = vmatpush1.bf16.msra.mxu0 0
    %723 = vmatprep.mubr.bf16.mxu0 0
    %724 = vmatmul.mubr.bf16.gmra.mrb[0].mxu0 %v689
    %v725 = vpop.f32.mrb[0].mxu0
    %v726 = vadd.f32 0.0, %v725
    %v727 = vpop.f32.mrb[0].mxu0
    %v728 = vpop.f32.mrb[0].mxu0
    %v729 = vpop.f32.mrb[0].mxu0
    %730 = vdwg.mxu0
    %v731 = vadd.f32 %v156, %v726
    %v732 = vxor.u32 %v731, 2147483648
    %v733 = vmul.f32 %v732, 1.442695
    %v734 = vpow.pop %v733
    %v735 = vadd.f32 %v734, 1.0
    %v736 = vrcp.pop %v735
    %v737 = vmul.f32 1.0, %v736
    %v738 = vtanh.pop %v731
    %v739 = vmul.f32 %v737, %v596
    %741 = vrot.lane.b32.xlu0 %v738, 64
    %v742 = vpop.permute.xlu0 %741
    %v744 = vmul.f32 %v737, %v742
    %746 = vrot.lane.b32.xlu0 %v744, 32
    %v747 = vpop.permute.xlu0 %746
    %v749 = vadd.f32 %v739, %v747
    %v750 = vtanh.pop %v749
    %752 = vrot.lane.b32.xlu0 %v750, 64
    %v753 = vpop.permute.xlu0 %752
    %v755 = vmul.f32 %v737, %v753
    %757 = vrot.lane.b32.xlu0 %v755, 32
    %v758 = vpop.permute.xlu0 %757
    %760 = vrot.lane.b32.xlu0 %v678, 64
    %v761 = vpop.permute.xlu0 %760
    %v763 = vsel %vm206, %v758, %v761
    %v764 = vpack.c.bf16 %v763, %v763
    %v766 = vsel %vm305, %v764, 0
    %768 = vmatprep.subr.bf16.mxu0 0
    %769 = vmatpush1.bf16.msra.mxu0 %v297
    %770 = vmatprep.subr.bf16.mxu0 0
    %771 = vmatpush1.bf16.msra.mxu0 %v298
    %772 = vmatprep.subr.bf16.mxu0 0
    %773 = vmatpush1.bf16.msra.mxu0 %v299
    %774 = vmatprep.subr.bf16.mxu0 0
    %775 = vmatpush1.bf16.msra.mxu0 %v300
    %776 = vmatprep.subr.bf16.mxu0 0
    %777 = vmatpush1.bf16.msra.mxu0 0
    %778 = vmatprep.subr.bf16.mxu0 0
    %779 = vmatpush1.bf16.msra.mxu0 0
    %780 = vmatprep.subr.bf16.mxu0 0
    %781 = vmatpush1.bf16.msra.mxu0 0
    %782 = vmatprep.subr.bf16.mxu0 0
    %783 = vmatpush1.bf16.msra.mxu0 0
    %784 = vmatprep.subr.bf16.mxu0 0
    %785 = vmatpush1.bf16.msra.mxu0 0
    %786 = vmatprep.subr.bf16.mxu0 0
    %787 = vmatpush1.bf16.msra.mxu0 0
    %788 = vmatprep.subr.bf16.mxu0 0
    %789 = vmatpush1.bf16.msra.mxu0 0
    %790 = vmatprep.subr.bf16.mxu0 0
    %791 = vmatpush1.bf16.msra.mxu0 0
    %792 = vmatprep.subr.bf16.mxu0 0
    %793 = vmatpush1.bf16.msra.mxu0 0
    %794 = vmatprep.subr.bf16.mxu0 0
    %795 = vmatpush1.bf16.msra.mxu0 0
    %796 = vmatprep.subr.bf16.mxu0 0
    %797 = vmatpush1.bf16.msra.mxu0 0
    %798 = vmatprep.subr.bf16.mxu0 0
    %799 = vmatpush1.bf16.msra.mxu0 0
    %800 = vmatprep.mubr.bf16.mxu0 0
    %801 = vmatmul.mubr.bf16.gmra.mrb[0].mxu0 %v766
    %v802 = vpop.f32.mrb[0].mxu0
    %v803 = vadd.f32 %v192, %v802
    %v804 = vpop.f32.mrb[0].mxu0
    %v805 = vpop.f32.mrb[0].mxu0
    %v806 = vpop.f32.mrb[0].mxu0
    %807 = vdwg.mxu0
    %v808 = vxor.u32 %v803, 2147483648
    %v809 = vmul.f32 %v808, 1.442695
    %v810 = vpow.pop %v809
    %v811 = vadd.f32 %v810, 1.0
    %v812 = vrcp.pop %v811
    %v813 = vmul.f32 1.0, %v812
    %v814 = vtanh.pop %v803
    %v815 = vmul.f32 %v813, %v672
    %817 = vrot.lane.b32.xlu0 %v814, 64
    %v818 = vpop.permute.xlu0 %817
    %v820 = vmul.f32 %v813, %v818
    %822 = vrot.lane.b32.xlu0 %v820, 32
    %v823 = vpop.permute.xlu0 %822
    %v825 = vadd.f32 %v815, %v823
    %v826 = vtanh.pop %v825
    %828 = vrot.lane.b32.xlu0 %v826, 64
    %v829 = vpop.permute.xlu0 %828
    %v831 = vmul.f32 %v813, %v829
    %833 = vrot.lane.b32.xlu0 %v831, 32
    %v834 = vpop.permute.xlu0 %833
    %836 = vst.msk [vmem:[#allocation2 + $0x18] sm:$0xff] %vm206, %v834
    %v837 = vpack.c.bf16 %v755, %v755
    %839 = vrot.lane.b32.xlu0 %v837, 32
    %v840 = vpop.permute.xlu0 %839
    %v842 = vsel %vm206, %v840, 0
    %844 = vmatprep.subr.bf16.mxu0 0
    %845 = vmatpush1.bf16.msra.mxu0 %v202
    %846 = vmatprep.subr.bf16.mxu0 0
    %847 = vmatpush1.bf16.msra.mxu0 %v203
    %848 = vmatprep.subr.bf16.mxu0 0
    %849 = vmatpush1.bf16.msra.mxu0 0
    %850 = vmatprep.subr.bf16.mxu0 0
    %851 = vmatpush1.bf16.msra.mxu0 0
    %852 = vmatprep.subr.bf16.mxu0 0
    %853 = vmatpush1.bf16.msra.mxu0 0
    %854 = vmatprep.subr.bf16.mxu0 0
    %855 = vmatpush1.bf16.msra.mxu0 0
    %856 = vmatprep.subr.bf16.mxu0 0
    %857 = vmatpush1.bf16.msra.mxu0 0
    %858 = vmatprep.subr.bf16.mxu0 0
    %859 = vmatpush1.bf16.msra.mxu0 0
    %860 = vmatprep.subr.bf16.mxu0 0
    %861 = vmatpush1.bf16.msra.mxu0 0
    %862 = vmatprep.subr.bf16.mxu0 0
    %863 = vmatpush1.bf16.msra.mxu0 0
    %864 = vmatprep.subr.bf16.mxu0 0
    %865 = vmatpush1.bf16.msra.mxu0 0
    %866 = vmatprep.subr.bf16.mxu0 0
    %867 = vmatpush1.bf16.msra.mxu0 0
    %868 = vmatprep.subr.bf16.mxu0 0
    %869 = vmatpush1.bf16.msra.mxu0 0
    %870 = vmatprep.subr.bf16.mxu0 0
    %871 = vmatpush1.bf16.msra.mxu0 0
    %872 = vmatprep.subr.bf16.mxu0 0
    %873 = vmatpush1.bf16.msra.mxu0 0
    %874 = vmatprep.subr.bf16.mxu0 0
    %875 = vmatpush1.bf16.msra.mxu0 0
    %876 = vmatprep.mubr.bf16.mxu0 0
    %877 = vmatmul.mubr.bf16.gmra.mrb[0].mxu0 %v842
    %v878 = vpop.f32.mrb[0].mxu0
    %v879 = vadd.f32 0.0, %v878
    %v880 = vpop.f32.mrb[0].mxu0
    %v881 = vpop.f32.mrb[0].mxu0
    %v882 = vpop.f32.mrb[0].mxu0
    %883 = vdwg.mxu0
    %v884 = vadd.f32 %v161, %v879
    %v885 = vxor.u32 %v884, 2147483648
    %v886 = vmul.f32 %v885, 1.442695
    %v887 = vpow.pop %v886
    %v888 = vadd.f32 %v887, 1.0
    %v889 = vrcp.pop %v888
    %v890 = vmul.f32 1.0, %v889
    %v891 = vtanh.pop %v884
    %v892 = vmul.f32 %v890, %v749
    %894 = vrot.lane.b32.xlu0 %v891, 64
    %v895 = vpop.permute.xlu0 %894
    %v897 = vmul.f32 %v890, %v895
    %899 = vrot.lane.b32.xlu0 %v897, 32
    %v900 = vpop.permute.xlu0 %899
    %v902 = vadd.f32 %v892, %v900
    %v903 = vtanh.pop %v902
    %905 = vrot.lane.b32.xlu0 %v903, 64
    %v906 = vpop.permute.xlu0 %905
    %v908 = vmul.f32 %v890, %v906
    %910 = vrot.lane.b32.xlu0 %v908, 32
    %v911 = vpop.permute.xlu0 %910
    %913 = vrot.lane.b32.xlu0 %v831, 64
    %v914 = vpop.permute.xlu0 %913
    %v916 = vsel %vm206, %v911, %v914
    %v917 = vpack.c.bf16 %v916, %v916
    %v919 = vsel %vm305, %v917, 0
    %921 = vmatprep.subr.bf16.mxu0 0
    %922 = vmatpush1.bf16.msra.mxu0 %v297
    %923 = vmatprep.subr.bf16.mxu0 0
    %924 = vmatpush1.bf16.msra.mxu0 %v298
    %925 = vmatprep.subr.bf16.mxu0 0
    %926 = vmatpush1.bf16.msra.mxu0 %v299
    %927 = vmatprep.subr.bf16.mxu0 0
    %928 = vmatpush1.bf16.msra.mxu0 %v300
    %929 = vmatprep.subr.bf16.mxu0 0
    %930 = vmatpush1.bf16.msra.mxu0 0
    %931 = vmatprep.subr.bf16.mxu0 0
    %932 = vmatpush1.bf16.msra.mxu0 0
    %933 = vmatprep.subr.bf16.mxu0 0
    %934 = vmatpush1.bf16.msra.mxu0 0
    %935 = vmatprep.subr.bf16.mxu0 0
    %936 = vmatpush1.bf16.msra.mxu0 0
    %937 = vmatprep.subr.bf16.mxu0 0
    %938 = vmatpush1.bf16.msra.mxu0 0
    %939 = vmatprep.subr.bf16.mxu0 0
    %940 = vmatpush1.bf16.msra.mxu0 0
    %941 = vmatprep.subr.bf16.mxu0 0
    %942 = vmatpush1.bf16.msra.mxu0 0
    %943 = vmatprep.subr.bf16.mxu0 0
    %944 = vmatpush1.bf16.msra.mxu0 0
    %945 = vmatprep.subr.bf16.mxu0 0
    %946 = vmatpush1.bf16.msra.mxu0 0
    %947 = vmatprep.subr.bf16.mxu0 0
    %948 = vmatpush1.bf16.msra.mxu0 0
    %949 = vmatprep.subr.bf16.mxu0 0
    %950 = vmatpush1.bf16.msra.mxu0 0
    %951 = vmatprep.subr.bf16.mxu0 0
    %952 = vmatpush1.bf16.msra.mxu0 0
    %953 = vmatprep.mubr.bf16.mxu0 0
    %954 = vmatmul.mubr.bf16.gmra.mrb[0].mxu0 %v919
    %v955 = vpop.f32.mrb[0].mxu0
    %v956 = vadd.f32 %v192, %v955
    %v957 = vpop.f32.mrb[0].mxu0
    %v958 = vpop.f32.mrb[0].mxu0
    %v959 = vpop.f32.mrb[0].mxu0
    %960 = vdwg.mxu0
    %v961 = vxor.u32 %v956, 2147483648
    %v962 = vmul.f32 %v961, 1.442695
    %v963 = vpow.pop %v962
    %v964 = vadd.f32 %v963, 1.0
    %v965 = vrcp.pop %v964
    %v966 = vmul.f32 1.0, %v965
    %v967 = vtanh.pop %v956
    %v968 = vmul.f32 %v966, %v825
    %970 = vrot.lane.b32.xlu0 %v967, 64
    %v971 = vpop.permute.xlu0 %970
    %v973 = vmul.f32 %v966, %v971
    %975 = vrot.lane.b32.xlu0 %v973, 32
    %v976 = vpop.permute.xlu0 %975
    %v978 = vadd.f32 %v968, %v976
    %v979 = vtanh.pop %v978
    %981 = vrot.lane.b32.xlu0 %v979, 64
    %v982 = vpop.permute.xlu0 %981
    %v984 = vmul.f32 %v966, %v982
    %986 = vrot.lane.b32.xlu0 %v984, 32
    %v987 = vpop.permute.xlu0 %986
    %989 = vst.msk [vmem:[#allocation2 + $0x20] sm:$0xff] %vm206, %v987
    %v990 = vpack.c.bf16 %v908, %v908
    %992 = vrot.lane.b32.xlu0 %v990, 32
    %v993 = vpop.permute.xlu0 %992
    %v995 = vsel %vm206, %v993, 0
    %997 = vmatprep.subr.bf16.mxu0 0
    %998 = vmatpush1.bf16.msra.mxu0 %v202
    %999 = vmatprep.subr.bf16.mxu0 0
    %1000 = vmatpush1.bf16.msra.mxu0 %v203
    %1001 = vmatprep.subr.bf16.mxu0 0
    %1002 = vmatpush1.bf16.msra.mxu0 0
    %1003 = vmatprep.subr.bf16.mxu0 0
    %1004 = vmatpush1.bf16.msra.mxu0 0
    %1005 = vmatprep.subr.bf16.mxu0 0
    %1006 = vmatpush1.bf16.msra.mxu0 0
    %1007 = vmatprep.subr.bf16.mxu0 0
    %1008 = vmatpush1.bf16.msra.mxu0 0
    %1009 = vmatprep.subr.bf16.mxu0 0
    %1010 = vmatpush1.bf16.msra.mxu0 0
    %1011 = vmatprep.subr.bf16.mxu0 0
    %1012 = vmatpush1.bf16.msra.mxu0 0
    %1013 = vmatprep.subr.bf16.mxu0 0
    %1014 = vmatpush1.bf16.msra.mxu0 0
    %1015 = vmatprep.subr.bf16.mxu0 0
    %1016 = vmatpush1.bf16.msra.mxu0 0
    %1017 = vmatprep.subr.bf16.mxu0 0
    %1018 = vmatpush1.bf16.msra.mxu0 0
    %1019 = vmatprep.subr.bf16.mxu0 0
    %1020 = vmatpush1.bf16.msra.mxu0 0
    %1021 = vmatprep.subr.bf16.mxu0 0
    %1022 = vmatpush1.bf16.msra.mxu0 0
    %1023 = vmatprep.subr.bf16.mxu0 0
    %1024 = vmatpush1.bf16.msra.mxu0 0
    %1025 = vmatprep.subr.bf16.mxu0 0
    %1026 = vmatpush1.bf16.msra.mxu0 0
    %1027 = vmatprep.subr.bf16.mxu0 0
    %1028 = vmatpush1.bf16.msra.mxu0 0
    %1029 = vmatprep.mubr.bf16.mxu0 0
    %1030 = vmatmul.mubr.bf16.gmra.mrb[0].mxu0 %v995
    %v1031 = vpop.f32.mrb[0].mxu0
    %v1032 = vadd.f32 0.0, %v1031
    %v1033 = vpop.f32.mrb[0].mxu0
    %v1034 = vpop.f32.mrb[0].mxu0
    %v1035 = vpop.f32.mrb[0].mxu0
    %1036 = vdwg.mxu0
    %v1037 = vadd.f32 %v164, %v1032
    %v1038 = vxor.u32 %v1037, 2147483648
    %v1039 = vmul.f32 %v1038, 1.442695
    %v1040 = vpow.pop %v1039
    %v1041 = vadd.f32 %v1040, 1.0
    %v1042 = vrcp.pop %v1041
    %v1043 = vmul.f32 1.0, %v1042
    %v1044 = vtanh.pop %v1037
    %v1045 = vmul.f32 %v1043, %v902
    %1047 = vrot.lane.b32.xlu0 %v1044, 64
    %v1048 = vpop.permute.xlu0 %1047
    %v1050 = vmul.f32 %v1043, %v1048
    %1052 = vrot.lane.b32.xlu0 %v1050, 32
    %v1053 = vpop.permute.xlu0 %1052
    %v1055 = vadd.f32 %v1045, %v1053
    %v1056 = vtanh.pop %v1055
    %1058 = vrot.lane.b32.xlu0 %v1056, 64
    %v1059 = vpop.permute.xlu0 %1058
    %v1061 = vmul.f32 %v1043, %v1059
    %1063 = vrot.lane.b32.xlu0 %v1061, 32
    %v1064 = vpop.permute.xlu0 %1063
    %1066 = vrot.lane.b32.xlu0 %v984, 64
    %v1067 = vpop.permute.xlu0 %1066
    %v1069 = vsel %vm206, %v1064, %v1067
    %v1070 = vpack.c.bf16 %v1069, %v1069
    %v1072 = vsel %vm305, %v1070, 0
    %1074 = vmatprep.subr.bf16.mxu0 0
    %1075 = vmatpush1.bf16.msra.mxu0 %v297
    %1076 = vmatprep.subr.bf16.mxu0 0
    %1077 = vmatpush1.bf16.msra.mxu0 %v298
    %1078 = vmatprep.subr.bf16.mxu0 0
    %1079 = vmatpush1.bf16.msra.mxu0 %v299
    %1080 = vmatprep.subr.bf16.mxu0 0
    %1081 = vmatpush1.bf16.msra.mxu0 %v300
    %1082 = vmatprep.subr.bf16.mxu0 0
    %1083 = vmatpush1.bf16.msra.mxu0 0
    %1084 = vmatprep.subr.bf16.mxu0 0
    %1085 = vmatpush1.bf16.msra.mxu0 0
    %1086 = vmatprep.subr.bf16.mxu0 0
    %1087 = vmatpush1.bf16.msra.mxu0 0
    %1088 = vmatprep.subr.bf16.mxu0 0
    %1089 = vmatpush1.bf16.msra.mxu0 0
    %1090 = vmatprep.subr.bf16.mxu0 0
    %1091 = vmatpush1.bf16.msra.mxu0 0
    %1092 = vmatprep.subr.bf16.mxu0 0
    %1093 = vmatpush1.bf16.msra.mxu0 0
    %1094 = vmatprep.subr.bf16.mxu0 0
    %1095 = vmatpush1.bf16.msra.mxu0 0
    %1096 = vmatprep.subr.bf16.mxu0 0
    %1097 = vmatpush1.bf16.msra.mxu0 0
    %1098 = vmatprep.subr.bf16.mxu0 0
    %1099 = vmatpush1.bf16.msra.mxu0 0
    %1100 = vmatprep.subr.bf16.mxu0 0
    %1101 = vmatpush1.bf16.msra.mxu0 0
    %1102 = vmatprep.subr.bf16.mxu0 0
    %1103 = vmatpush1.bf16.msra.mxu0 0
    %1104 = vmatprep.subr.bf16.mxu0 0
    %1105 = vmatpush1.bf16.msra.mxu0 0
    %1106 = vmatprep.mubr.bf16.mxu0 0
    %1107 = vmatmul.mubr.bf16.gmra.mrb[0].mxu0 %v1072
    %v1108 = vpop.f32.mrb[0].mxu0
    %v1109 = vadd.f32 %v192, %v1108
    %v1110 = vpop.f32.mrb[0].mxu0
    %v1111 = vpop.f32.mrb[0].mxu0
    %v1112 = vpop.f32.mrb[0].mxu0
    %1113 = vdwg.mxu0
    %v1114 = vxor.u32 %v1109, 2147483648
    %v1115 = vmul.f32 %v1114, 1.442695
    %v1116 = vpow.pop %v1115
    %v1117 = vadd.f32 %v1116, 1.0
    %v1118 = vrcp.pop %v1117
    %v1119 = vmul.f32 1.0, %v1118
    %v1120 = vtanh.pop %v1109
    %v1121 = vmul.f32 %v1119, %v978
    %1123 = vrot.lane.b32.xlu0 %v1120, 64
    %v1124 = vpop.permute.xlu0 %1123
    %v1126 = vmul.f32 %v1119, %v1124
    %1128 = vrot.lane.b32.xlu0 %v1126, 32
    %v1129 = vpop.permute.xlu0 %1128
    %v1131 = vadd.f32 %v1121, %v1129
    %v1132 = vtanh.pop %v1131
    %1134 = vrot.lane.b32.xlu0 %v1132, 64
    %v1135 = vpop.permute.xlu0 %1134
    %v1137 = vmul.f32 %v1119, %v1135
    %1139 = vrot.lane.b32.xlu0 %v1137, 32
    %v1140 = vpop.permute.xlu0 %1139
    %1142 = vst.msk [vmem:[#allocation2 + $0x28] sm:$0xff] %vm206, %v1140
    %v1143 = vpack.c.bf16 %v1061, %v1061
    %1145 = vrot.lane.b32.xlu0 %v1143, 32
    %v1146 = vpop.permute.xlu0 %1145
    %v1148 = vsel %vm206, %v1146, 0
    %1150 = vmatprep.subr.bf16.mxu0 0
    %1151 = vmatpush1.bf16.msra.mxu0 %v202
    %1152 = vmatprep.subr.bf16.mxu0 0
    %1153 = vmatpush1.bf16.msra.mxu0 %v203
    %1154 = vmatprep.subr.bf16.mxu0 0
    %1155 = vmatpush1.bf16.msra.mxu0 0
    %1156 = vmatprep.subr.bf16.mxu0 0
    %1157 = vmatpush1.bf16.msra.mxu0 0
    %1158 = vmatprep.subr.bf16.mxu0 0
    %1159 = vmatpush1.bf16.msra.mxu0 0
    %1160 = vmatprep.subr.bf16.mxu0 0
    %1161 = vmatpush1.bf16.msra.mxu0 0
    %1162 = vmatprep.subr.bf16.mxu0 0
    %1163 = vmatpush1.bf16.msra.mxu0 0
    %1164 = vmatprep.subr.bf16.mxu0 0
    %1165 = vmatpush1.bf16.msra.mxu0 0
    %1166 = vmatprep.subr.bf16.mxu0 0
    %1167 = vmatpush1.bf16.msra.mxu0 0
    %1168 = vmatprep.subr.bf16.mxu0 0
    %1169 = vmatpush1.bf16.msra.mxu0 0
    %1170 = vmatprep.subr.bf16.mxu0 0
    %1171 = vmatpush1.bf16.msra.mxu0 0
    %1172 = vmatprep.subr.bf16.mxu0 0
    %1173 = vmatpush1.bf16.msra.mxu0 0
    %1174 = vmatprep.subr.bf16.mxu0 0
    %1175 = vmatpush1.bf16.msra.mxu0 0
    %1176 = vmatprep.subr.bf16.mxu0 0
    %1177 = vmatpush1.bf16.msra.mxu0 0
    %1178 = vmatprep.subr.bf16.mxu0 0
    %1179 = vmatpush1.bf16.msra.mxu0 0
    %1180 = vmatprep.subr.bf16.mxu0 0
    %1181 = vmatpush1.bf16.msra.mxu0 0
    %1182 = vmatprep.mubr.bf16.mxu0 0
    %1183 = vmatmul.mubr.bf16.gmra.mrb[0].mxu0 %v1148
    %v1184 = vpop.f32.mrb[0].mxu0
    %v1185 = vadd.f32 0.0, %v1184
    %v1186 = vpop.f32.mrb[0].mxu0
    %v1187 = vpop.f32.mrb[0].mxu0
    %v1188 = vpop.f32.mrb[0].mxu0
    %1189 = vdwg.mxu0
    %v1190 = vadd.f32 %v169, %v1185
    %v1191 = vxor.u32 %v1190, 2147483648
    %v1192 = vmul.f32 %v1191, 1.442695
    %v1193 = vpow.pop %v1192
    %v1194 = vadd.f32 %v1193, 1.0
    %v1195 = vrcp.pop %v1194
    %v1196 = vmul.f32 1.0, %v1195
    %v1197 = vtanh.pop %v1190
    %v1198 = vmul.f32 %v1196, %v1055
    %1200 = vrot.lane.b32.xlu0 %v1197, 64
    %v1201 = vpop.permute.xlu0 %1200
    %v1203 = vmul.f32 %v1196, %v1201
    %1205 = vrot.lane.b32.xlu0 %v1203, 32
    %v1206 = vpop.permute.xlu0 %1205
    %v1208 = vadd.f32 %v1198, %v1206
    %v1209 = vtanh.pop %v1208
    %1211 = vrot.lane.b32.xlu0 %v1209, 64
    %v1212 = vpop.permute.xlu0 %1211
    %v1214 = vmul.f32 %v1196, %v1212
    %1216 = vrot.lane.b32.xlu0 %v1214, 32
    %v1217 = vpop.permute.xlu0 %1216
    %1219 = vrot.lane.b32.xlu0 %v1137, 64
    %v1220 = vpop.permute.xlu0 %1219
    %v1222 = vsel %vm206, %v1217, %v1220
    %v1223 = vpack.c.bf16 %v1222, %v1222
    %v1225 = vsel %vm305, %v1223, 0
    %1227 = vmatprep.subr.bf16.mxu0 0
    %1228 = vmatpush1.bf16.msra.mxu0 %v297
    %1229 = vmatprep.subr.bf16.mxu0 0
    %1230 = vmatpush1.bf16.msra.mxu0 %v298
    %1231 = vmatprep.subr.bf16.mxu0 0
    %1232 = vmatpush1.bf16.msra.mxu0 %v299
    %1233 = vmatprep.subr.bf16.mxu0 0
    %1234 = vmatpush1.bf16.msra.mxu0 %v300
    %1235 = vmatprep.subr.bf16.mxu0 0
    %1236 = vmatpush1.bf16.msra.mxu0 0
    %1237 = vmatprep.subr.bf16.mxu0 0
    %1238 = vmatpush1.bf16.msra.mxu0 0
    %1239 = vmatprep.subr.bf16.mxu0 0
    %1240 = vmatpush1.bf16.msra.mxu0 0
    %1241 = vmatprep.subr.bf16.mxu0 0
    %1242 = vmatpush1.bf16.msra.mxu0 0
    %1243 = vmatprep.subr.bf16.mxu0 0
    %1244 = vmatpush1.bf16.msra.mxu0 0
    %1245 = vmatprep.subr.bf16.mxu0 0
    %1246 = vmatpush1.bf16.msra.mxu0 0
    %1247 = vmatprep.subr.bf16.mxu0 0
    %1248 = vmatpush1.bf16.msra.mxu0 0
    %1249 = vmatprep.subr.bf16.mxu0 0
    %1250 = vmatpush1.bf16.msra.mxu0 0
    %1251 = vmatprep.subr.bf16.mxu0 0
    %1252 = vmatpush1.bf16.msra.mxu0 0
    %1253 = vmatprep.subr.bf16.mxu0 0
    %1254 = vmatpush1.bf16.msra.mxu0 0
    %1255 = vmatprep.subr.bf16.mxu0 0
    %1256 = vmatpush1.bf16.msra.mxu0 0
    %1257 = vmatprep.subr.bf16.mxu0 0
    %1258 = vmatpush1.bf16.msra.mxu0 0
    %1259 = vmatprep.mubr.bf16.mxu0 0
    %1260 = vmatmul.mubr.bf16.gmra.mrb[0].mxu0 %v1225
    %v1261 = vpop.f32.mrb[0].mxu0
    %v1262 = vadd.f32 %v192, %v1261
    %v1263 = vpop.f32.mrb[0].mxu0
    %v1264 = vpop.f32.mrb[0].mxu0
    %v1265 = vpop.f32.mrb[0].mxu0
    %1266 = vdwg.mxu0
    %v1267 = vxor.u32 %v1262, 2147483648
    %v1268 = vmul.f32 %v1267, 1.442695
    %v1269 = vpow.pop %v1268
    %v1270 = vadd.f32 %v1269, 1.0
    %v1271 = vrcp.pop %v1270
    %v1272 = vmul.f32 1.0, %v1271
    %v1273 = vtanh.pop %v1262
    %v1274 = vmul.f32 %v1272, %v1131
    %1276 = vrot.lane.b32.xlu0 %v1273, 64
    %v1277 = vpop.permute.xlu0 %1276
    %v1279 = vmul.f32 %v1272, %v1277
    %1281 = vrot.lane.b32.xlu0 %v1279, 32
    %v1282 = vpop.permute.xlu0 %1281
    %v1284 = vadd.f32 %v1274, %v1282
    %v1285 = vtanh.pop %v1284
    %1287 = vrot.lane.b32.xlu0 %v1285, 64
    %v1288 = vpop.permute.xlu0 %1287
    %v1290 = vmul.f32 %v1272, %v1288
    %1292 = vrot.lane.b32.xlu0 %v1290, 32
    %v1293 = vpop.permute.xlu0 %1292
    %1295 = vst.msk [vmem:[#allocation2 + $0x30] sm:$0xff] %vm206, %v1293
    %v1296 = vpack.c.bf16 %v1214, %v1214
    %1298 = vrot.lane.b32.xlu0 %v1296, 32
    %v1299 = vpop.permute.xlu0 %1298
    %v1301 = vsel %vm206, %v1299, 0
    %1303 = vmatprep.subr.bf16.mxu0 0
    %1304 = vmatpush1.bf16.msra.mxu0 %v202
    %1305 = vmatprep.subr.bf16.mxu0 0
    %1306 = vmatpush1.bf16.msra.mxu0 %v203
    %1307 = vmatprep.subr.bf16.mxu0 0
    %1308 = vmatpush1.bf16.msra.mxu0 0
    %1309 = vmatprep.subr.bf16.mxu0 0
    %1310 = vmatpush1.bf16.msra.mxu0 0
    %1311 = vmatprep.subr.bf16.mxu0 0
    %1312 = vmatpush1.bf16.msra.mxu0 0
    %1313 = vmatprep.subr.bf16.mxu0 0
    %1314 = vmatpush1.bf16.msra.mxu0 0
    %1315 = vmatprep.subr.bf16.mxu0 0
    %1316 = vmatpush1.bf16.msra.mxu0 0
    %1317 = vmatprep.subr.bf16.mxu0 0
    %1318 = vmatpush1.bf16.msra.mxu0 0
    %1319 = vmatprep.subr.bf16.mxu0 0
    %1320 = vmatpush1.bf16.msra.mxu0 0
    %1321 = vmatprep.subr.bf16.mxu0 0
    %1322 = vmatpush1.bf16.msra.mxu0 0
    %1323 = vmatprep.subr.bf16.mxu0 0
    %1324 = vmatpush1.bf16.msra.mxu0 0
    %1325 = vmatprep.subr.bf16.mxu0 0
    %1326 = vmatpush1.bf16.msra.mxu0 0
    %1327 = vmatprep.subr.bf16.mxu0 0
    %1328 = vmatpush1.bf16.msra.mxu0 0
    %1329 = vmatprep.subr.bf16.mxu0 0
    %1330 = vmatpush1.bf16.msra.mxu0 0
    %1331 = vmatprep.subr.bf16.mxu0 0
    %1332 = vmatpush1.bf16.msra.mxu0 0
    %1333 = vmatprep.subr.bf16.mxu0 0
    %1334 = vmatpush1.bf16.msra.mxu0 0
    %1335 = vmatprep.mubr.bf16.mxu0 0
    %1336 = vmatmul.mubr.bf16.gmra.mrb[0].mxu0 %v1301
    %v1337 = vpop.f32.mrb[0].mxu0
    %v1338 = vadd.f32 0.0, %v1337
    %v1339 = vpop.f32.mrb[0].mxu0
    %v1340 = vpop.f32.mrb[0].mxu0
    %v1341 = vpop.f32.mrb[0].mxu0
    %1342 = vdwg.mxu0
    %v1343 = vadd.f32 %v172, %v1338
    %v1344 = vxor.u32 %v1343, 2147483648
    %v1345 = vmul.f32 %v1344, 1.442695
    %v1346 = vpow.pop %v1345
    %v1347 = vadd.f32 %v1346, 1.0
    %v1348 = vrcp.pop %v1347
    %v1349 = vmul.f32 1.0, %v1348
    %v1350 = vtanh.pop %v1343
    %v1351 = vmul.f32 %v1349, %v1208
    %1353 = vrot.lane.b32.xlu0 %v1350, 64
    %v1354 = vpop.permute.xlu0 %1353
    %v1356 = vmul.f32 %v1349, %v1354
    %1358 = vrot.lane.b32.xlu0 %v1356, 32
    %v1359 = vpop.permute.xlu0 %1358
    %v1361 = vadd.f32 %v1351, %v1359
    %v1362 = vtanh.pop %v1361
    %1364 = vrot.lane.b32.xlu0 %v1362, 64
    %v1365 = vpop.permute.xlu0 %1364
    %v1367 = vmul.f32 %v1349, %v1365
    %1369 = vrot.lane.b32.xlu0 %v1367, 32
    %v1370 = vpop.permute.xlu0 %1369
    %1372 = vrot.lane.b32.xlu0 %v1290, 64
    %v1373 = vpop.permute.xlu0 %1372
    %v1375 = vsel %vm206, %v1370, %v1373
    %v1376 = vpack.c.bf16 %v1375, %v1375
    %v1378 = vsel %vm305, %v1376, 0
    %1380 = vmatprep.subr.bf16.mxu0 0
    %1381 = vmatpush1.bf16.msra.mxu0 %v297
    %1382 = vmatprep.subr.bf16.mxu0 0
    %1383 = vmatpush1.bf16.msra.mxu0 %v298
    %1384 = vmatprep.subr.bf16.mxu0 0
    %1385 = vmatpush1.bf16.msra.mxu0 %v299
    %1386 = vmatprep.subr.bf16.mxu0 0
    %1387 = vmatpush1.bf16.msra.mxu0 %v300
    %1388 = vmatprep.subr.bf16.mxu0 0
    %1389 = vmatpush1.bf16.msra.mxu0 0
    %1390 = vmatprep.subr.bf16.mxu0 0
    %1391 = vmatpush1.bf16.msra.mxu0 0
    %1392 = vmatprep.subr.bf16.mxu0 0
    %1393 = vmatpush1.bf16.msra.mxu0 0
    %1394 = vmatprep.subr.bf16.mxu0 0
    %1395 = vmatpush1.bf16.msra.mxu0 0
    %1396 = vmatprep.subr.bf16.mxu0 0
    %1397 = vmatpush1.bf16.msra.mxu0 0
    %1398 = vmatprep.subr.bf16.mxu0 0
    %1399 = vmatpush1.bf16.msra.mxu0 0
    %1400 = vmatprep.subr.bf16.mxu0 0
    %1401 = vmatpush1.bf16.msra.mxu0 0
    %1402 = vmatprep.subr.bf16.mxu0 0
    %1403 = vmatpush1.bf16.msra.mxu0 0
    %1404 = vmatprep.subr.bf16.mxu0 0
    %1405 = vmatpush1.bf16.msra.mxu0 0
    %1406 = vmatprep.subr.bf16.mxu0 0
    %1407 = vmatpush1.bf16.msra.mxu0 0
    %1408 = vmatprep.subr.bf16.mxu0 0
    %1409 = vmatpush1.bf16.msra.mxu0 0
    %1410 = vmatprep.subr.bf16.mxu0 0
    %1411 = vmatpush1.bf16.msra.mxu0 0
    %1412 = vmatprep.mubr.bf16.mxu0 0
    %1413 = vmatmul.mubr.bf16.gmra.mrb[0].mxu0 %v1378
    %v1414 = vpop.f32.mrb[0].mxu0
    %v1415 = vadd.f32 %v192, %v1414
    %v1416 = vpop.f32.mrb[0].mxu0
    %v1417 = vpop.f32.mrb[0].mxu0
    %v1418 = vpop.f32.mrb[0].mxu0
    %1419 = vdwg.mxu0
    %v1420 = vxor.u32 %v1415, 2147483648
    %v1421 = vmul.f32 %v1420, 1.442695
    %v1422 = vpow.pop %v1421
    %v1423 = vadd.f32 %v1422, 1.0
    %v1424 = vrcp.pop %v1423
    %v1425 = vmul.f32 1.0, %v1424
    %v1426 = vtanh.pop %v1415
    %v1427 = vmul.f32 %v1425, %v1284
    %1429 = vrot.lane.b32.xlu0 %v1426, 64
    %v1430 = vpop.permute.xlu0 %1429
    %v1432 = vmul.f32 %v1425, %v1430
    %1434 = vrot.lane.b32.xlu0 %v1432, 32
    %v1435 = vpop.permute.xlu0 %1434
    %v1437 = vadd.f32 %v1427, %v1435
    %v1438 = vtanh.pop %v1437
    %1440 = vrot.lane.b32.xlu0 %v1438, 64
    %v1441 = vpop.permute.xlu0 %1440
    %v1443 = vmul.f32 %v1425, %v1441
    %1445 = vrot.lane.b32.xlu0 %v1443, 32
    %v1446 = vpop.permute.xlu0 %1445
    %1448 = vst.msk [vmem:[#allocation2 + $0x38] sm:$0xff] %vm206, %v1446
    %v1449 = vld [vmem:[#allocation2] sm:$0xff]
    %v1450 = vld [vmem:[#allocation2 + $0x8] sm:$0xff]
    %v1451 = vld [vmem:[#allocation2 + $0x10] sm:$0xff]
    %v1452 = vld [vmem:[#allocation2 + $0x18] sm:$0xff]
    %v1453 = vld [vmem:[#allocation2 + $0x20] sm:$0xff]
    %v1454 = vld [vmem:[#allocation2 + $0x28] sm:$0xff]
    %v1455 = vld [vmem:[#allocation2 + $0x30] sm:$0xff]
    %v1456 = vld [vmem:[#allocation2 + $0x38] sm:$0xff]
    %v1457 = vpack.c.bf16 %v1450, %v1449
    %v1458 = vpack.c.bf16 %v1452, %v1451
    %v1459 = vpack.c.bf16 %v1454, %v1453
    %v1460 = vpack.c.bf16 %v1456, %v1455
    %v1461 = vld [vmem:[%s6] sm:$0xf]
    %v1462 = vld [vmem:[%s6 + $0x4] sm:$0xf]
    %v1463 = vld [vmem:[%s6 + $0x8] sm:$0xf]
    %v1464 = vld [vmem:[%s6 + $0xc] sm:$0xf]
    %v1465 = vld [vmem:[%s7] sm:$0x1]
    %v1467 = vlaneseq
    %v1468 = vshrl.u32 %v1467, 7
    %v1469 = vsub.s32 0, %v1468
    %v1470 = vrot.slane %v1465, %v1469
    %v1476 = vunpack.c.l.b16 %v1461
    %v1477 = vunpack.c.l.b16 %v1462
    %v1478 = vunpack.c.l.b16 %v1463
    %v1479 = vunpack.c.l.b16 %v1464
    %v1480 = vpack.c.b16 %v1477, %v1476
    %v1481 = vpack.c.b16 %v1479, %v1478
    %v1485 = vsel %vm206, %v1457, 0
    %v1488 = vsel %vm206, %v1458, 0
    %v1491 = vsel %vm206, %v1459, 0
    %v1494 = vsel %vm206, %v1460, 0
    %1496 = vmatprep.subr.bf16.mxu0 0
    %1497 = vmatpush1.bf16.msra.mxu0 %v1480
    %1498 = vmatprep.subr.bf16.mxu0 0
    %1499 = vmatpush1.bf16.msra.mxu0 %v1481
    %1500 = vmatprep.subr.bf16.mxu0 0
    %1501 = vmatpush1.bf16.msra.mxu0 0
    %1502 = vmatprep.subr.bf16.mxu0 0
    %1503 = vmatpush1.bf16.msra.mxu0 0
    %1504 = vmatprep.subr.bf16.mxu0 0
    %1505 = vmatpush1.bf16.msra.mxu0 0
    %1506 = vmatprep.subr.bf16.mxu0 0
    %1507 = vmatpush1.bf16.msra.mxu0 0
    %1508 = vmatprep.subr.bf16.mxu0 0
    %1509 = vmatpush1.bf16.msra.mxu0 0
    %1510 = vmatprep.subr.bf16.mxu0 0
    %1511 = vmatpush1.bf16.msra.mxu0 0
    %1512 = vmatprep.subr.bf16.mxu0 0
    %1513 = vmatpush1.bf16.msra.mxu0 0
    %1514 = vmatprep.subr.bf16.mxu0 0
    %1515 = vmatpush1.bf16.msra.mxu0 0
    %1516 = vmatprep.subr.bf16.mxu0 0
    %1517 = vmatpush1.bf16.msra.mxu0 0
    %1518 = vmatprep.subr.bf16.mxu0 0
    %1519 = vmatpush1.bf16.msra.mxu0 0
    %1520 = vmatprep.subr.bf16.mxu0 0
    %1521 = vmatpush1.bf16.msra.mxu0 0
    %1522 = vmatprep.subr.bf16.mxu0 0
    %1523 = vmatpush1.bf16.msra.mxu0 0
    %1524 = vmatprep.subr.bf16.mxu0 0
    %1525 = vmatpush1.bf16.msra.mxu0 0
    %1526 = vmatprep.subr.bf16.mxu0 0
    %1527 = vmatpush1.bf16.msra.mxu0 0
    %1528 = vmatprep.mubr.bf16.mxu0 0
    %1529 = vmatmul.mubr.bf16.gmra.mrb[0].mxu0 %v1485
    %v1530 = vpop.f32.mrb[0].mxu0
    %v1531 = vadd.f32 %v1470, %v1530
    %v1532 = vpop.f32.mrb[0].mxu0
    %v1533 = vpop.f32.mrb[0].mxu0
    %v1534 = vadd.f32 %v1470, %v1533
    %v1535 = vpop.f32.mrb[0].mxu0
    %1536 = vmatprep.mubr.bf16.mxu0 0
    %1537 = vmatmul.mubr.bf16.gmra.mrb[0].mxu0 %v1488
    %v1538 = vpop.f32.mrb[0].mxu0
    %v1539 = vadd.f32 %v1470, %v1538
    %v1540 = vpop.f32.mrb[0].mxu0
    %v1541 = vpop.f32.mrb[0].mxu0
    %v1542 = vadd.f32 %v1470, %v1541
    %v1543 = vpop.f32.mrb[0].mxu0
    %1544 = vmatprep.mubr.bf16.mxu0 0
    %1545 = vmatmul.mubr.bf16.gmra.mrb[0].mxu0 %v1491
    %v1546 = vpop.f32.mrb[0].mxu0
    %v1547 = vadd.f32 %v1470, %v1546
    %v1548 = vpop.f32.mrb[0].mxu0
    %v1549 = vpop.f32.mrb[0].mxu0
    %v1550 = vadd.f32 %v1470, %v1549
    %v1551 = vpop.f32.mrb[0].mxu0
    %1552 = vmatprep.mubr.bf16.mxu0 0
    %1553 = vmatmul.mubr.bf16.gmra.mrb[0].mxu0 %v1494
    %v1554 = vpop.f32.mrb[0].mxu0
    %v1555 = vadd.f32 %v1470, %v1554
    %v1556 = vpop.f32.mrb[0].mxu0
    %v1557 = vpop.f32.mrb[0].mxu0
    %v1558 = vadd.f32 %v1470, %v1557
    %v1559 = vpop.f32.mrb[0].mxu0
    %1560 = vdwg.mxu0
    %1561 = vst [vmem:[#allocation8] sm:$0xff] %v1531
    %1562 = vst [vmem:[#allocation8 + $0x8] sm:$0xff] %v1534
    %1563 = vst [vmem:[#allocation8 + $0x10] sm:$0xff] %v1539
    %1564 = vst [vmem:[#allocation8 + $0x18] sm:$0xff] %v1542
    %1565 = vst [vmem:[#allocation8 + $0x20] sm:$0xff] %v1547
    %1566 = vst [vmem:[#allocation8 + $0x28] sm:$0xff] %v1550
    %1567 = vst [vmem:[#allocation8 + $0x30] sm:$0xff] %v1555
    %1568 = vst [vmem:[#allocation8 + $0x38] sm:$0xff] %v1558
    // Predicated region
    $region42: #{tpu_custom_call.1} parent=1 // pred_check
      _
    $region43: #{tpu_custom_call.1} parent=1 // pred_check_branch
      %1570 = sbr.rel (0) target = $region45
    $region44: #{tpu_custom_call.1} parent=1 // pred_region
      %s1572 = ssub.s32 1024, 1024
      %1573 = vsyncadd [#allocation5], %s1572
      %s1574 = sshll.u32 [#allocation8], 4
      %s1575 = int_to_ptr.vmem [resolvable:$true] %s1574
      %1580 = dma.vmem_to_hbm [thread:$0]  %s1575, 1024, %s8, [#allocation5], 128, 128, 8
    $region45: #{tpu_custom_call.1} parent=1 // pred_fallthru
      _
    // Predicated region
    $region46: #{tpu_custom_call.1} parent=1 // pred_check
      _
    $region47: #{tpu_custom_call.1} parent=1 // pred_check_branch
      %1582 = sbr.rel (0) target = $region49
    $region48: #{tpu_custom_call.1} parent=1 // pred_region
      %1583 = dma.done [#allocation5], 1024
    $region49: #{tpu_custom_call.1} parent=1 // pred_fallthru
      _
    %1584 = vsyncpa [#allocation4], 1
    %1585 = vsyncpa [#allocation7], 1
    %1586 = vsyncpa [#allocation5], 1

</llo_original>
